<compile_context>
chip_gen: v5e
topology: v5e:2x2
jax: 0.10.0
libtpu: 0.0.40
codegen_flags: <defaults>
</compile_context>

<pallas_src>
import jax
import jax.numpy as jnp
from jax.experimental import pallas as pl
from jax.experimental.pallas import tpu as pltpu

# ---- small synthetic configuration (consistent with the module's forward) ----
BATCH = 2
SEQ_LEN = 8        # context length L
D_MODEL = 32       # transformer width
N_HEADS = 4
N_LAYERS = 2
EMBED_DIM = 16     # text_projection output dim
EPS = 1e-5
NEG_BIAS = -1e30   # finite mask fill (softmax-safe in f32)


def _layernorm(x, g, b):
    # var = E[x^2] - mu^2 : the two row reductions are independent and can
    # overlap in the XLU instead of serializing behind a VPU subtract.
    mu = jnp.mean(x, axis=-1, keepdims=True)
    ms = jnp.mean(x * x, axis=-1, keepdims=True)
    var = ms - mu * mu
    return (x - mu) * jax.lax.rsqrt(var + EPS) * g + b


# -------------------------- fused kernel --------------------------

def fused_text_encoder_kernel(
    eot_ref,                                   # (B,)  int32 flat EOT rows, SMEM
    x_ref, pos_ref, mask_ref,                  # (BL,D), (BL,D), (BL,BL)
    ln1_g_ref, ln1_b_ref,
    wqkv_ref, bqkv_ref,                        # (NL,D,3D), (NL,1,3D)  (scale folded into q)
    wo_ref, bo_ref,                            # (NL,D,D),  (NL,1,D)
    ln2_g_ref, ln2_b_ref,
    wfc_ref, bfc_ref, wpr_ref, bpr_ref,
    lnf_g_ref, lnf_b_ref,
    proj_ref,                                  # (D,E)
    o_ref,                                     # (B,E)
    xs_ref, sel_ref,                           # VMEM scratch: (BL,D), (B,D)
):
    D = x_ref.shape[1]
    NL = wqkv_ref.shape[0]
    H = N_HEADS
    Dh = D // H
    B = o_ref.shape[0]

    # positional embedding add; mask hoisted (reused by every layer / head)
    x = x_ref[...] + pos_ref[...]
    mask_bias = mask_ref[...]

    for l in range(NL):
        # ---- multi-head causal self-attention ----
        h = _layernorm(x, ln1_g_ref[l], ln1_b_ref[l])
        # one fused QKV projection per layer (96-lane wide instead of 12 x 8-lane)
        qkv = jnp.dot(h, wqkv_ref[l], preferred_element_type=jnp.float32) + bqkv_ref[l]

        ctx_heads = []
        for hi in range(H):
            qh = qkv[:, hi * Dh:(hi + 1) * Dh]
            kh = qkv[:, D + hi * Dh: D + (hi + 1) * Dh]
            vh = qkv[:, 2 * D + hi * Dh: 2 * D + (hi + 1) * Dh]
            # scores over the flattened batch; block-diag mask keeps the
            # sequences independent and enforces causality. (scale is folded
            # into the q weights at init.)
            s = jax.lax.dot_general(
                qh, kh, (((1,), (1,)), ((), ())),
                preferred_element_type=jnp.float32) + mask_bias
            # explicit softmax: divide -> EUP approx reciprocal (free slot)
            m = jnp.max(s, axis=-1, keepdims=True)
            e = jnp.exp(s - m)
            p = e * pl.reciprocal(jnp.sum(e, axis=-1, keepdims=True), approx=True)
            ctx_heads.append(jnp.dot(p, vh, preferred_element_type=jnp.float32))

        # lane-concat the heads and hit the unsplit out-projection once
        ctx = jnp.concatenate(ctx_heads, axis=-1)                      # (BL, D)
        x = x + jnp.dot(ctx, wo_ref[l], preferred_element_type=jnp.float32) + bo_ref[l]

        # ---- MLP: c_fc -> QuickGELU -> c_proj ----
        h2 = _layernorm(x, ln2_g_ref[l], ln2_b_ref[l])
        u = jnp.dot(h2, wfc_ref[l], preferred_element_type=jnp.float32) + bfc_ref[l]
        u = u * jax.nn.sigmoid(1.702 * u)                              # QuickGELU
        x = x + jnp.dot(u, wpr_ref[l], preferred_element_type=jnp.float32) + bpr_ref[l]

    # ---- EOT gather (dynamic sublane slices from SMEM indices) ----
    # LayerNorm is per-token, so gather-then-LN == LN-then-gather.
    xs_ref[...] = x
    for b in range(B):
        idx = eot_ref[b]
        sel_ref[pl.ds(b, 1), :] = xs_ref[pl.ds(idx, 1), :]

    hf = _layernorm(sel_ref[...], lnf_g_ref[...], lnf_b_ref[...])
    o_ref[...] = jnp.dot(hf, proj_ref[...],
                         preferred_element_type=jnp.float32).astype(o_ref.dtype)


# -------------------------- wrapper --------------------------

def text_encoder_forward(prompts, tokenized_prompts, params):
    B, L, D = prompts.shape
    E = params["text_projection"].shape[1]
    BL = B * L

    # glue: flatten batch into sublanes, tile the positional embedding
    x_flat = prompts.reshape(BL, D)
    pos_tiled = jnp.tile(params["positional_embedding"], (B, 1))            # (BL, D)

    # glue: block-diagonal causal additive mask (0 allowed / -1e30 masked)
    idx = jnp.arange(BL)
    same_seq = (idx[:, None] // L) == (idx[None, :] // L)
    causal = idx[None, :] <= idx[:, None]
    mask_bias = jnp.where(same_seq & causal, 0.0, NEG_BIAS).astype(jnp.float32)

    # glue: flat EOT row indices (argmax over token ids, as in CLIP)
    eot_flat = (jnp.arange(B) * L
                + jnp.argmax(tokenized_prompts, axis=-1)).astype(jnp.int32)  # (B,)

    smem_spec = pl.BlockSpec(memory_space=pltpu.MemorySpace.SMEM)
    vmem_spec = pl.BlockSpec(memory_space=pltpu.MemorySpace.VMEM)
    n_inputs = 19

    out = pl.pallas_call(
        fused_text_encoder_kernel,
        out_shape=jax.ShapeDtypeStruct((B, E), prompts.dtype),
        in_specs=[smem_spec] + [vmem_spec] * (n_inputs - 1),
        out_specs=vmem_spec,
        scratch_shapes=[pltpu.VMEM((BL, D), jnp.float32),    # final activations
                        pltpu.VMEM((B, D), jnp.float32)],    # gathered EOT rows
    )(
        eot_flat, x_flat, pos_tiled, mask_bias,
        params["ln1_g"], params["ln1_b"],
        params["wqkv"], params["bqkv"],
        params["wo"], params["bo"],
        params["ln2_g"], params["ln2_b"],
        params["wfc"], params["bfc"], params["wpr"], params["bpr"],
        params["ln_final_g"], params["ln_final_b"],
        params["text_projection"],
    )
    return out


# -------------------------- deterministic parameter init --------------------------

def init_params(key):
    D, L, E, H, NL = D_MODEL, SEQ_LEN, EMBED_DIM, N_HEADS, N_LAYERS
    Dh = D // H
    scale = 1.0 / (Dh ** 0.5)
    keys = jax.random.split(key, 2 + NL)

    def nrm(k, shape, s=0.02):
        return s * jax.random.normal(k, shape, dtype=jnp.float32)

    wqkv, bqkv, wo, bo = [], [], [], []
    wfc, bfc, wpr, bpr = [], [], [], []
    ln1_g, ln1_b, ln2_g, ln2_b = [], [], [], []

    for i in range(NL):
        lk = jax.random.split(keys[2 + i], 8)
        # PyTorch layouts: in_proj_weight (3D, D); out_proj.weight (D, D);
        # c_fc.weight (4D, D); c_proj.weight (D, 4D).  nn.Linear computes x @ W.T.
        in_proj_w = nrm(lk[0], (3 * D, D)); in_proj_b = nrm(lk[1], (3 * D,))
        out_proj_w = nrm(lk[2], (D, D));    out_proj_b = nrm(lk[3], (D,))
        c_fc_w = nrm(lk[4], (4 * D, D));    c_fc_b = nrm(lk[5], (4 * D,))
        c_proj_w = nrm(lk[6], (D, 4 * D));  c_proj_b = nrm(lk[7], (D,))

        # fused QKV: qkv = x @ in_proj_w.T + in_proj_b, columns = [q | k | v],
        # each third laid out head-major so per-head lane slices are static.
        # Fold the 1/sqrt(Dh) attention scale into the q third (one-time
        # host-side transform of the parameter).
        col_scale = jnp.concatenate(
            [jnp.full((D,), scale, jnp.float32), jnp.ones((2 * D,), jnp.float32)])
        wqkv.append(in_proj_w.T * col_scale[None, :])          # (D, 3D)
        bqkv.append((in_proj_b * col_scale).reshape(1, 3 * D))

        wo.append(out_proj_w.T)                                # (D, D): ctx @ Wo.T
        bo.append(out_proj_b.reshape(1, D))
        wfc.append(c_fc_w.T)                                   # (D, 4D)
        bfc.append(c_fc_b.reshape(1, 4 * D))
        wpr.append(c_proj_w.T)                                 # (4D, D)
        bpr.append(c_proj_b.reshape(1, D))
        ln1_g.append(jnp.ones((1, D), jnp.float32)); ln1_b.append(jnp.zeros((1, D), jnp.float32))
        ln2_g.append(jnp.ones((1, D), jnp.float32)); ln2_b.append(jnp.zeros((1, D), jnp.float32))

    params = {
        "positional_embedding": nrm(keys[0], (L, D), 0.01),
        "ln_final_g": jnp.ones((1, D), jnp.float32),
        "ln_final_b": jnp.zeros((1, D), jnp.float32),
        "text_projection": nrm(keys[1], (D, E)),
        # layer-stacked parameters
        "wqkv": jnp.stack(wqkv), "bqkv": jnp.stack(bqkv),
        "wo": jnp.stack(wo), "bo": jnp.stack(bo),
        "ln1_g": jnp.stack(ln1_g), "ln1_b": jnp.stack(ln1_b),
        "ln2_g": jnp.stack(ln2_g), "ln2_b": jnp.stack(ln2_b),
        "wfc": jnp.stack(wfc), "bfc": jnp.stack(bfc),
        "wpr": jnp.stack(wpr), "bpr": jnp.stack(bpr),
    }
    return params


if __name__ == "__main__":
    key = jax.random.PRNGKey(0)
    k_prompts, k_tok, k_params = jax.random.split(key, 3)

    prompts = 0.02 * jax.random.normal(
        k_prompts, (BATCH, SEQ_LEN, D_MODEL), dtype=jnp.float32)
    tokenized_prompts = jax.random.randint(
        k_tok, (BATCH, SEQ_LEN), 1, 1000, dtype=jnp.int32)

    params = init_params(k_params)

    out = text_encoder_forward(prompts, tokenized_prompts, params)
    out = jax.block_until_ready(out)
    assert out.shape == (BATCH, EMBED_DIM) and out.dtype == jnp.float32
    print("KERNEL_OK")
</pallas_src>

<mosaic_0001>
module attributes {stable_mosaic.version = 11 : i64} {
  func.func @fused_text_encoder_kernel(%arg0: memref<2xi32, #tpu.memory_space<smem>>, %arg1: memref<16x32xf32, #tpu.memory_space<vmem>>, %arg2: memref<16x32xf32, #tpu.memory_space<vmem>>, %arg3: memref<16x16xf32, #tpu.memory_space<vmem>>, %arg4: memref<2x1x32xf32, #tpu.memory_space<vmem>>, %arg5: memref<2x1x32xf32, #tpu.memory_space<vmem>>, %arg6: memref<2x32x96xf32, #tpu.memory_space<vmem>>, %arg7: memref<2x1x96xf32, #tpu.memory_space<vmem>>, %arg8: memref<2x32x32xf32, #tpu.memory_space<vmem>>, %arg9: memref<2x1x32xf32, #tpu.memory_space<vmem>>, %arg10: memref<2x1x32xf32, #tpu.memory_space<vmem>>, %arg11: memref<2x1x32xf32, #tpu.memory_space<vmem>>, %arg12: memref<2x32x128xf32, #tpu.memory_space<vmem>>, %arg13: memref<2x1x128xf32, #tpu.memory_space<vmem>>, %arg14: memref<2x128x32xf32, #tpu.memory_space<vmem>>, %arg15: memref<2x1x32xf32, #tpu.memory_space<vmem>>, %arg16: memref<1x32xf32, #tpu.memory_space<vmem>>, %arg17: memref<1x32xf32, #tpu.memory_space<vmem>>, %arg18: memref<32x16xf32, #tpu.memory_space<vmem>>, %arg19: memref<2x16xf32, #tpu.memory_space<vmem>>, %arg20: memref<16x32xf32, #tpu.memory_space<vmem>>, %arg21: memref<2x32xf32, #tpu.memory_space<vmem>>) attributes {dimension_semantics = [], scalar_prefetch = 0 : i64, scratch_operands = 2 : i64, tpu.core_type = #tpu.core_type<tc>} {
    %c0 = arith.constant 0 : index
    %c0_0 = arith.constant 0 : index
    %0 = vector.load %arg1[%c0, %c0_0] : memref<16x32xf32, #tpu.memory_space<vmem>>, vector<16x32xf32>
    %c0_1 = arith.constant 0 : index
    %c0_2 = arith.constant 0 : index
    %1 = vector.load %arg2[%c0_1, %c0_2] : memref<16x32xf32, #tpu.memory_space<vmem>>, vector<16x32xf32>
    %2 = arith.addf %0, %1 : vector<16x32xf32>
    %c0_3 = arith.constant 0 : index
    %c0_4 = arith.constant 0 : index
    %3 = vector.load %arg3[%c0_3, %c0_4] : memref<16x16xf32, #tpu.memory_space<vmem>>, vector<16x16xf32>
    %c0_5 = arith.constant 0 : index
    %c0_6 = arith.constant 0 : index
    %c0_7 = arith.constant 0 : index
    %4 = vector.load %arg4[%c0_5, %c0_6, %c0_7] : memref<2x1x32xf32, #tpu.memory_space<vmem>>, vector<1x1x32xf32>
    %5 = vector.shape_cast %4 : vector<1x1x32xf32> to vector<1x32xf32>
    %c0_8 = arith.constant 0 : index
    %c0_9 = arith.constant 0 : index
    %c0_10 = arith.constant 0 : index
    %6 = vector.load %arg5[%c0_8, %c0_9, %c0_10] : memref<2x1x32xf32, #tpu.memory_space<vmem>>, vector<1x1x32xf32>
    %7 = vector.shape_cast %6 : vector<1x1x32xf32> to vector<1x32xf32>
    %cst = arith.constant dense<0.000000e+00> : vector<16xf32>
    %8 = vector.multi_reduction <add>, %2, %cst [1] : vector<16x32xf32> to vector<16xf32>
    %9 = vector.shape_cast %8 : vector<16xf32> to vector<16x1xf32>
    %cst_11 = arith.constant 3.200000e+01 : f32
    %10 = vector.broadcast %cst_11 : f32 to vector<16x1xf32>
    %11 = arith.divf %9, %10 : vector<16x1xf32>
    %12 = arith.mulf %2, %2 : vector<16x32xf32>
    %cst_12 = arith.constant dense<0.000000e+00> : vector<16xf32>
    %13 = vector.multi_reduction <add>, %12, %cst_12 [1] : vector<16x32xf32> to vector<16xf32>
    %14 = vector.shape_cast %13 : vector<16xf32> to vector<16x1xf32>
    %cst_13 = arith.constant 3.200000e+01 : f32
    %15 = vector.broadcast %cst_13 : f32 to vector<16x1xf32>
    %16 = arith.divf %14, %15 : vector<16x1xf32>
    %17 = arith.mulf %11, %11 : vector<16x1xf32>
    %18 = arith.subf %16, %17 : vector<16x1xf32>
    %19 = vector.broadcast %11 : vector<16x1xf32> to vector<16x32xf32>
    %20 = arith.subf %2, %19 : vector<16x32xf32>
    %cst_14 = arith.constant 9.99999974E-6 : f32
    %21 = vector.broadcast %cst_14 : f32 to vector<16x1xf32>
    %22 = arith.addf %18, %21 : vector<16x1xf32>
    %23 = math.rsqrt %22 : vector<16x1xf32>
    %24 = vector.broadcast %23 : vector<16x1xf32> to vector<16x32xf32>
    %25 = arith.mulf %20, %24 : vector<16x32xf32>
    %26 = vector.broadcast %5 : vector<1x32xf32> to vector<16x32xf32>
    %27 = arith.mulf %25, %26 : vector<16x32xf32>
    %28 = vector.broadcast %7 : vector<1x32xf32> to vector<16x32xf32>
    %29 = arith.addf %27, %28 : vector<16x32xf32>
    %c0_15 = arith.constant 0 : index
    %c0_16 = arith.constant 0 : index
    %c0_17 = arith.constant 0 : index
    %30 = vector.load %arg6[%c0_15, %c0_16, %c0_17] : memref<2x32x96xf32, #tpu.memory_space<vmem>>, vector<1x32x96xf32>
    %31 = vector.shape_cast %30 : vector<1x32x96xf32> to vector<32x96xf32>
    %cst_18 = arith.constant dense<0.000000e+00> : vector<16x96xf32>
    %32 = tpu.matmul %29, %31, %cst_18 {dimension_numbers = #tpu.dot_dimension_numbers<[1], [0], [0], [1], [0, 0, 1, 1], [], []>} : vector<16x32xf32>, vector<32x96xf32>, vector<16x96xf32> -> vector<16x96xf32>
    %c0_19 = arith.constant 0 : index
    %c0_20 = arith.constant 0 : index
    %c0_21 = arith.constant 0 : index
    %33 = vector.load %arg7[%c0_19, %c0_20, %c0_21] : memref<2x1x96xf32, #tpu.memory_space<vmem>>, vector<1x1x96xf32>
    %34 = vector.shape_cast %33 : vector<1x1x96xf32> to vector<1x96xf32>
    %35 = vector.broadcast %34 : vector<1x96xf32> to vector<16x96xf32>
    %36 = arith.addf %32, %35 : vector<16x96xf32>
    %37 = vector.extract_strided_slice %36 {offsets = [0, 0], sizes = [16, 8], strides = [1, 1]} : vector<16x96xf32> to vector<16x8xf32>
    %38 = vector.extract_strided_slice %36 {offsets = [0, 32], sizes = [16, 8], strides = [1, 1]} : vector<16x96xf32> to vector<16x8xf32>
    %39 = vector.extract_strided_slice %36 {offsets = [0, 64], sizes = [16, 8], strides = [1, 1]} : vector<16x96xf32> to vector<16x8xf32>
    %cst_22 = arith.constant dense<0.000000e+00> : vector<16x16xf32>
    %40 = tpu.matmul %37, %38, %cst_22 {dimension_numbers = #tpu.dot_dimension_numbers<[1], [1], [0], [0], [0, 0, 1, 0], [], []>} : vector<16x8xf32>, vector<16x8xf32>, vector<16x16xf32> -> vector<16x16xf32>
    %41 = arith.addf %40, %3 : vector<16x16xf32>
    %cst_23 = arith.constant dense<0xFF800000> : vector<16xf32>
    %42 = vector.multi_reduction <maximumf>, %41, %cst_23 [1] : vector<16x16xf32> to vector<16xf32>
    %43 = vector.shape_cast %42 : vector<16xf32> to vector<16x1xf32>
    %44 = vector.broadcast %43 : vector<16x1xf32> to vector<16x16xf32>
    %45 = arith.subf %41, %44 : vector<16x16xf32>
    %46 = math.exp %45 : vector<16x16xf32>
    %cst_24 = arith.constant dense<0.000000e+00> : vector<16xf32>
    %47 = vector.multi_reduction <add>, %46, %cst_24 [1] : vector<16x16xf32> to vector<16xf32>
    %48 = vector.shape_cast %47 : vector<16xf32> to vector<16x1xf32>
    %49 = tpu.reciprocal %48 {approx = true} : vector<16x1xf32> -> vector<16x1xf32>
    %50 = vector.broadcast %49 : vector<16x1xf32> to vector<16x16xf32>
    %51 = arith.mulf %46, %50 : vector<16x16xf32>
    %cst_25 = arith.constant dense<0.000000e+00> : vector<16x8xf32>
    %52 = tpu.matmul %51, %39, %cst_25 {dimension_numbers = #tpu.dot_dimension_numbers<[1], [0], [0], [1], [0, 0, 1, 1], [], []>} : vector<16x16xf32>, vector<16x8xf32>, vector<16x8xf32> -> vector<16x8xf32>
    %53 = vector.extract_strided_slice %36 {offsets = [0, 8], sizes = [16, 8], strides = [1, 1]} : vector<16x96xf32> to vector<16x8xf32>
    %54 = vector.extract_strided_slice %36 {offsets = [0, 40], sizes = [16, 8], strides = [1, 1]} : vector<16x96xf32> to vector<16x8xf32>
    %55 = vector.extract_strided_slice %36 {offsets = [0, 72], sizes = [16, 8], strides = [1, 1]} : vector<16x96xf32> to vector<16x8xf32>
    %cst_26 = arith.constant dense<0.000000e+00> : vector<16x16xf32>
    %56 = tpu.matmul %53, %54, %cst_26 {dimension_numbers = #tpu.dot_dimension_numbers<[1], [1], [0], [0], [0, 0, 1, 0], [], []>} : vector<16x8xf32>, vector<16x8xf32>, vector<16x16xf32> -> vector<16x16xf32>
    %57 = arith.addf %56, %3 : vector<16x16xf32>
    %cst_27 = arith.constant dense<0xFF800000> : vector<16xf32>
    %58 = vector.multi_reduction <maximumf>, %57, %cst_27 [1] : vector<16x16xf32> to vector<16xf32>
    %59 = vector.shape_cast %58 : vector<16xf32> to vector<16x1xf32>
    %60 = vector.broadcast %59 : vector<16x1xf32> to vector<16x16xf32>
    %61 = arith.subf %57, %60 : vector<16x16xf32>
    %62 = math.exp %61 : vector<16x16xf32>
    %cst_28 = arith.constant dense<0.000000e+00> : vector<16xf32>
    %63 = vector.multi_reduction <add>, %62, %cst_28 [1] : vector<16x16xf32> to vector<16xf32>
    %64 = vector.shape_cast %63 : vector<16xf32> to vector<16x1xf32>
    %65 = tpu.reciprocal %64 {approx = true} : vector<16x1xf32> -> vector<16x1xf32>
    %66 = vector.broadcast %65 : vector<16x1xf32> to vector<16x16xf32>
    %67 = arith.mulf %62, %66 : vector<16x16xf32>
    %cst_29 = arith.constant dense<0.000000e+00> : vector<16x8xf32>
    %68 = tpu.matmul %67, %55, %cst_29 {dimension_numbers = #tpu.dot_dimension_numbers<[1], [0], [0], [1], [0, 0, 1, 1], [], []>} : vector<16x16xf32>, vector<16x8xf32>, vector<16x8xf32> -> vector<16x8xf32>
    %69 = vector.extract_strided_slice %36 {offsets = [0, 16], sizes = [16, 8], strides = [1, 1]} : vector<16x96xf32> to vector<16x8xf32>
    %70 = vector.extract_strided_slice %36 {offsets = [0, 48], sizes = [16, 8], strides = [1, 1]} : vector<16x96xf32> to vector<16x8xf32>
    %71 = vector.extract_strided_slice %36 {offsets = [0, 80], sizes = [16, 8], strides = [1, 1]} : vector<16x96xf32> to vector<16x8xf32>
    %cst_30 = arith.constant dense<0.000000e+00> : vector<16x16xf32>
    %72 = tpu.matmul %69, %70, %cst_30 {dimension_numbers = #tpu.dot_dimension_numbers<[1], [1], [0], [0], [0, 0, 1, 0], [], []>} : vector<16x8xf32>, vector<16x8xf32>, vector<16x16xf32> -> vector<16x16xf32>
    %73 = arith.addf %72, %3 : vector<16x16xf32>
    %cst_31 = arith.constant dense<0xFF800000> : vector<16xf32>
    %74 = vector.multi_reduction <maximumf>, %73, %cst_31 [1] : vector<16x16xf32> to vector<16xf32>
    %75 = vector.shape_cast %74 : vector<16xf32> to vector<16x1xf32>
    %76 = vector.broadcast %75 : vector<16x1xf32> to vector<16x16xf32>
    %77 = arith.subf %73, %76 : vector<16x16xf32>
    %78 = math.exp %77 : vector<16x16xf32>
    %cst_32 = arith.constant dense<0.000000e+00> : vector<16xf32>
    %79 = vector.multi_reduction <add>, %78, %cst_32 [1] : vector<16x16xf32> to vector<16xf32>
    %80 = vector.shape_cast %79 : vector<16xf32> to vector<16x1xf32>
    %81 = tpu.reciprocal %80 {approx = true} : vector<16x1xf32> -> vector<16x1xf32>
    %82 = vector.broadcast %81 : vector<16x1xf32> to vector<16x16xf32>
    %83 = arith.mulf %78, %82 : vector<16x16xf32>
    %cst_33 = arith.constant dense<0.000000e+00> : vector<16x8xf32>
    %84 = tpu.matmul %83, %71, %cst_33 {dimension_numbers = #tpu.dot_dimension_numbers<[1], [0], [0], [1], [0, 0, 1, 1], [], []>} : vector<16x16xf32>, vector<16x8xf32>, vector<16x8xf32> -> vector<16x8xf32>
    %85 = vector.extract_strided_slice %36 {offsets = [0, 24], sizes = [16, 8], strides = [1, 1]} : vector<16x96xf32> to vector<16x8xf32>
    %86 = vector.extract_strided_slice %36 {offsets = [0, 56], sizes = [16, 8], strides = [1, 1]} : vector<16x96xf32> to vector<16x8xf32>
    %87 = vector.extract_strided_slice %36 {offsets = [0, 88], sizes = [16, 8], strides = [1, 1]} : vector<16x96xf32> to vector<16x8xf32>
    %cst_34 = arith.constant dense<0.000000e+00> : vector<16x16xf32>
    %88 = tpu.matmul %85, %86, %cst_34 {dimension_numbers = #tpu.dot_dimension_numbers<[1], [1], [0], [0], [0, 0, 1, 0], [], []>} : vector<16x8xf32>, vector<16x8xf32>, vector<16x16xf32> -> vector<16x16xf32>
    %89 = arith.addf %88, %3 : vector<16x16xf32>
    %cst_35 = arith.constant dense<0xFF800000> : vector<16xf32>
    %90 = vector.multi_reduction <maximumf>, %89, %cst_35 [1] : vector<16x16xf32> to vector<16xf32>
    %91 = vector.shape_cast %90 : vector<16xf32> to vector<16x1xf32>
    %92 = vector.broadcast %91 : vector<16x1xf32> to vector<16x16xf32>
    %93 = arith.subf %89, %92 : vector<16x16xf32>
    %94 = math.exp %93 : vector<16x16xf32>
    %cst_36 = arith.constant dense<0.000000e+00> : vector<16xf32>
    %95 = vector.multi_reduction <add>, %94, %cst_36 [1] : vector<16x16xf32> to vector<16xf32>
    %96 = vector.shape_cast %95 : vector<16xf32> to vector<16x1xf32>
    %97 = tpu.reciprocal %96 {approx = true} : vector<16x1xf32> -> vector<16x1xf32>
    %98 = vector.broadcast %97 : vector<16x1xf32> to vector<16x16xf32>
    %99 = arith.mulf %94, %98 : vector<16x16xf32>
    %cst_37 = arith.constant dense<0.000000e+00> : vector<16x8xf32>
    %100 = tpu.matmul %99, %87, %cst_37 {dimension_numbers = #tpu.dot_dimension_numbers<[1], [0], [0], [1], [0, 0, 1, 1], [], []>} : vector<16x16xf32>, vector<16x8xf32>, vector<16x8xf32> -> vector<16x8xf32>
    %101 = tpu.concatenate %52, %68, %84, %100 in 1 : vector<16x8xf32>, vector<16x8xf32>, vector<16x8xf32>, vector<16x8xf32> -> vector<16x32xf32>
    %c0_38 = arith.constant 0 : index
    %c0_39 = arith.constant 0 : index
    %c0_40 = arith.constant 0 : index
    %102 = vector.load %arg8[%c0_38, %c0_39, %c0_40] : memref<2x32x32xf32, #tpu.memory_space<vmem>>, vector<1x32x32xf32>
    %103 = vector.shape_cast %102 : vector<1x32x32xf32> to vector<32x32xf32>
    %cst_41 = arith.constant dense<0.000000e+00> : vector<16x32xf32>
    %104 = tpu.matmul %101, %103, %cst_41 {dimension_numbers = #tpu.dot_dimension_numbers<[1], [0], [0], [1], [0, 0, 1, 1], [], []>} : vector<16x32xf32>, vector<32x32xf32>, vector<16x32xf32> -> vector<16x32xf32>
    %105 = arith.addf %2, %104 : vector<16x32xf32>
    %c0_42 = arith.constant 0 : index
    %c0_43 = arith.constant 0 : index
    %c0_44 = arith.constant 0 : index
    %106 = vector.load %arg9[%c0_42, %c0_43, %c0_44] : memref<2x1x32xf32, #tpu.memory_space<vmem>>, vector<1x1x32xf32>
    %107 = vector.shape_cast %106 : vector<1x1x32xf32> to vector<1x32xf32>
    %108 = vector.broadcast %107 : vector<1x32xf32> to vector<16x32xf32>
    %109 = arith.addf %105, %108 : vector<16x32xf32>
    %c0_45 = arith.constant 0 : index
    %c0_46 = arith.constant 0 : index
    %c0_47 = arith.constant 0 : index
    %110 = vector.load %arg10[%c0_45, %c0_46, %c0_47] : memref<2x1x32xf32, #tpu.memory_space<vmem>>, vector<1x1x32xf32>
    %111 = vector.shape_cast %110 : vector<1x1x32xf32> to vector<1x32xf32>
    %c0_48 = arith.constant 0 : index
    %c0_49 = arith.constant 0 : index
    %c0_50 = arith.constant 0 : index
    %112 = vector.load %arg11[%c0_48, %c0_49, %c0_50] : memref<2x1x32xf32, #tpu.memory_space<vmem>>, vector<1x1x32xf32>
    %113 = vector.shape_cast %112 : vector<1x1x32xf32> to vector<1x32xf32>
    %cst_51 = arith.constant dense<0.000000e+00> : vector<16xf32>
    %114 = vector.multi_reduction <add>, %109, %cst_51 [1] : vector<16x32xf32> to vector<16xf32>
    %115 = vector.shape_cast %114 : vector<16xf32> to vector<16x1xf32>
    %cst_52 = arith.constant 3.200000e+01 : f32
    %116 = vector.broadcast %cst_52 : f32 to vector<16x1xf32>
    %117 = arith.divf %115, %116 : vector<16x1xf32>
    %118 = arith.mulf %109, %109 : vector<16x32xf32>
    %cst_53 = arith.constant dense<0.000000e+00> : vector<16xf32>
    %119 = vector.multi_reduction <add>, %118, %cst_53 [1] : vector<16x32xf32> to vector<16xf32>
    %120 = vector.shape_cast %119 : vector<16xf32> to vector<16x1xf32>
    %cst_54 = arith.constant 3.200000e+01 : f32
    %121 = vector.broadcast %cst_54 : f32 to vector<16x1xf32>
    %122 = arith.divf %120, %121 : vector<16x1xf32>
    %123 = arith.mulf %117, %117 : vector<16x1xf32>
    %124 = arith.subf %122, %123 : vector<16x1xf32>
    %125 = vector.broadcast %117 : vector<16x1xf32> to vector<16x32xf32>
    %126 = arith.subf %109, %125 : vector<16x32xf32>
    %cst_55 = arith.constant 9.99999974E-6 : f32
    %127 = vector.broadcast %cst_55 : f32 to vector<16x1xf32>
    %128 = arith.addf %124, %127 : vector<16x1xf32>
    %129 = math.rsqrt %128 : vector<16x1xf32>
    %130 = vector.broadcast %129 : vector<16x1xf32> to vector<16x32xf32>
    %131 = arith.mulf %126, %130 : vector<16x32xf32>
    %132 = vector.broadcast %111 : vector<1x32xf32> to vector<16x32xf32>
    %133 = arith.mulf %131, %132 : vector<16x32xf32>
    %134 = vector.broadcast %113 : vector<1x32xf32> to vector<16x32xf32>
    %135 = arith.addf %133, %134 : vector<16x32xf32>
    %c0_56 = arith.constant 0 : index
    %c0_57 = arith.constant 0 : index
    %c0_58 = arith.constant 0 : index
    %136 = vector.load %arg12[%c0_56, %c0_57, %c0_58] : memref<2x32x128xf32, #tpu.memory_space<vmem>>, vector<1x32x128xf32>
    %137 = vector.shape_cast %136 : vector<1x32x128xf32> to vector<32x128xf32>
    %cst_59 = arith.constant dense<0.000000e+00> : vector<16x128xf32>
    %138 = tpu.matmul %135, %137, %cst_59 {dimension_numbers = #tpu.dot_dimension_numbers<[1], [0], [0], [1], [0, 0, 1, 1], [], []>} : vector<16x32xf32>, vector<32x128xf32>, vector<16x128xf32> -> vector<16x128xf32>
    %c0_60 = arith.constant 0 : index
    %c0_61 = arith.constant 0 : index
    %c0_62 = arith.constant 0 : index
    %139 = vector.load %arg13[%c0_60, %c0_61, %c0_62] : memref<2x1x128xf32, #tpu.memory_space<vmem>>, vector<1x1x128xf32>
    %140 = vector.shape_cast %139 : vector<1x1x128xf32> to vector<1x128xf32>
    %141 = vector.broadcast %140 : vector<1x128xf32> to vector<16x128xf32>
    %142 = arith.addf %138, %141 : vector<16x128xf32>
    %cst_63 = arith.constant 1.702000e+00 : f32
    %143 = vector.broadcast %cst_63 : f32 to vector<16x128xf32>
    %144 = arith.mulf %143, %142 : vector<16x128xf32>
    %145 = arith.negf %144 : vector<16x128xf32>
    %146 = math.exp %145 : vector<16x128xf32>
    %cst_64 = arith.constant 1.000000e+00 : f32
    %147 = vector.broadcast %cst_64 : f32 to vector<16x128xf32>
    %148 = arith.addf %147, %146 : vector<16x128xf32>
    %149 = arith.divf %147, %148 : vector<16x128xf32>
    %150 = arith.mulf %142, %149 : vector<16x128xf32>
    %c0_65 = arith.constant 0 : index
    %c0_66 = arith.constant 0 : index
    %c0_67 = arith.constant 0 : index
    %151 = vector.load %arg14[%c0_65, %c0_66, %c0_67] : memref<2x128x32xf32, #tpu.memory_space<vmem>>, vector<1x128x32xf32>
    %152 = vector.shape_cast %151 : vector<1x128x32xf32> to vector<128x32xf32>
    %cst_68 = arith.constant dense<0.000000e+00> : vector<16x32xf32>
    %153 = tpu.matmul %150, %152, %cst_68 {dimension_numbers = #tpu.dot_dimension_numbers<[1], [0], [0], [1], [0, 0, 1, 1], [], []>} : vector<16x128xf32>, vector<128x32xf32>, vector<16x32xf32> -> vector<16x32xf32>
    %154 = arith.addf %109, %153 : vector<16x32xf32>
    %c0_69 = arith.constant 0 : index
    %c0_70 = arith.constant 0 : index
    %c0_71 = arith.constant 0 : index
    %155 = vector.load %arg15[%c0_69, %c0_70, %c0_71] : memref<2x1x32xf32, #tpu.memory_space<vmem>>, vector<1x1x32xf32>
    %156 = vector.shape_cast %155 : vector<1x1x32xf32> to vector<1x32xf32>
    %157 = vector.broadcast %156 : vector<1x32xf32> to vector<16x32xf32>
    %158 = arith.addf %154, %157 : vector<16x32xf32>
    %c1 = arith.constant 1 : index
    %c0_72 = arith.constant 0 : index
    %c0_73 = arith.constant 0 : index
    %159 = vector.load %arg4[%c1, %c0_72, %c0_73] : memref<2x1x32xf32, #tpu.memory_space<vmem>>, vector<1x1x32xf32>
    %160 = vector.shape_cast %159 : vector<1x1x32xf32> to vector<1x32xf32>
    %c1_74 = arith.constant 1 : index
    %c0_75 = arith.constant 0 : index
    %c0_76 = arith.constant 0 : index
    %161 = vector.load %arg5[%c1_74, %c0_75, %c0_76] : memref<2x1x32xf32, #tpu.memory_space<vmem>>, vector<1x1x32xf32>
    %162 = vector.shape_cast %161 : vector<1x1x32xf32> to vector<1x32xf32>
    %cst_77 = arith.constant dense<0.000000e+00> : vector<16xf32>
    %163 = vector.multi_reduction <add>, %158, %cst_77 [1] : vector<16x32xf32> to vector<16xf32>
    %164 = vector.shape_cast %163 : vector<16xf32> to vector<16x1xf32>
    %cst_78 = arith.constant 3.200000e+01 : f32
    %165 = vector.broadcast %cst_78 : f32 to vector<16x1xf32>
    %166 = arith.divf %164, %165 : vector<16x1xf32>
    %167 = arith.mulf %158, %158 : vector<16x32xf32>
    %cst_79 = arith.constant dense<0.000000e+00> : vector<16xf32>
    %168 = vector.multi_reduction <add>, %167, %cst_79 [1] : vector<16x32xf32> to vector<16xf32>
    %169 = vector.shape_cast %168 : vector<16xf32> to vector<16x1xf32>
    %cst_80 = arith.constant 3.200000e+01 : f32
    %170 = vector.broadcast %cst_80 : f32 to vector<16x1xf32>
    %171 = arith.divf %169, %170 : vector<16x1xf32>
    %172 = arith.mulf %166, %166 : vector<16x1xf32>
    %173 = arith.subf %171, %172 : vector<16x1xf32>
    %174 = vector.broadcast %166 : vector<16x1xf32> to vector<16x32xf32>
    %175 = arith.subf %158, %174 : vector<16x32xf32>
    %cst_81 = arith.constant 9.99999974E-6 : f32
    %176 = vector.broadcast %cst_81 : f32 to vector<16x1xf32>
    %177 = arith.addf %173, %176 : vector<16x1xf32>
    %178 = math.rsqrt %177 : vector<16x1xf32>
    %179 = vector.broadcast %178 : vector<16x1xf32> to vector<16x32xf32>
    %180 = arith.mulf %175, %179 : vector<16x32xf32>
    %181 = vector.broadcast %160 : vector<1x32xf32> to vector<16x32xf32>
    %182 = arith.mulf %180, %181 : vector<16x32xf32>
    %183 = vector.broadcast %162 : vector<1x32xf32> to vector<16x32xf32>
    %184 = arith.addf %182, %183 : vector<16x32xf32>
    %c1_82 = arith.constant 1 : index
    %c0_83 = arith.constant 0 : index
    %c0_84 = arith.constant 0 : index
    %185 = vector.load %arg6[%c1_82, %c0_83, %c0_84] : memref<2x32x96xf32, #tpu.memory_space<vmem>>, vector<1x32x96xf32>
    %186 = vector.shape_cast %185 : vector<1x32x96xf32> to vector<32x96xf32>
    %cst_85 = arith.constant dense<0.000000e+00> : vector<16x96xf32>
    %187 = tpu.matmul %184, %186, %cst_85 {dimension_numbers = #tpu.dot_dimension_numbers<[1], [0], [0], [1], [0, 0, 1, 1], [], []>} : vector<16x32xf32>, vector<32x96xf32>, vector<16x96xf32> -> vector<16x96xf32>
    %c1_86 = arith.constant 1 : index
    %c0_87 = arith.constant 0 : index
    %c0_88 = arith.constant 0 : index
    %188 = vector.load %arg7[%c1_86, %c0_87, %c0_88] : memref<2x1x96xf32, #tpu.memory_space<vmem>>, vector<1x1x96xf32>
    %189 = vector.shape_cast %188 : vector<1x1x96xf32> to vector<1x96xf32>
    %190 = vector.broadcast %189 : vector<1x96xf32> to vector<16x96xf32>
    %191 = arith.addf %187, %190 : vector<16x96xf32>
    %192 = vector.extract_strided_slice %191 {offsets = [0, 0], sizes = [16, 8], strides = [1, 1]} : vector<16x96xf32> to vector<16x8xf32>
    %193 = vector.extract_strided_slice %191 {offsets = [0, 32], sizes = [16, 8], strides = [1, 1]} : vector<16x96xf32> to vector<16x8xf32>
    %194 = vector.extract_strided_slice %191 {offsets = [0, 64], sizes = [16, 8], strides = [1, 1]} : vector<16x96xf32> to vector<16x8xf32>
    %cst_89 = arith.constant dense<0.000000e+00> : vector<16x16xf32>
    %195 = tpu.matmul %192, %193, %cst_89 {dimension_numbers = #tpu.dot_dimension_numbers<[1], [1], [0], [0], [0, 0, 1, 0], [], []>} : vector<16x8xf32>, vector<16x8xf32>, vector<16x16xf32> -> vector<16x16xf32>
    %196 = arith.addf %195, %3 : vector<16x16xf32>
    %cst_90 = arith.constant dense<0xFF800000> : vector<16xf32>
    %197 = vector.multi_reduction <maximumf>, %196, %cst_90 [1] : vector<16x16xf32> to vector<16xf32>
    %198 = vector.shape_cast %197 : vector<16xf32> to vector<16x1xf32>
    %199 = vector.broadcast %198 : vector<16x1xf32> to vector<16x16xf32>
    %200 = arith.subf %196, %199 : vector<16x16xf32>
    %201 = math.exp %200 : vector<16x16xf32>
    %cst_91 = arith.constant dense<0.000000e+00> : vector<16xf32>
    %202 = vector.multi_reduction <add>, %201, %cst_91 [1] : vector<16x16xf32> to vector<16xf32>
    %203 = vector.shape_cast %202 : vector<16xf32> to vector<16x1xf32>
    %204 = tpu.reciprocal %203 {approx = true} : vector<16x1xf32> -> vector<16x1xf32>
    %205 = vector.broadcast %204 : vector<16x1xf32> to vector<16x16xf32>
    %206 = arith.mulf %201, %205 : vector<16x16xf32>
    %cst_92 = arith.constant dense<0.000000e+00> : vector<16x8xf32>
    %207 = tpu.matmul %206, %194, %cst_92 {dimension_numbers = #tpu.dot_dimension_numbers<[1], [0], [0], [1], [0, 0, 1, 1], [], []>} : vector<16x16xf32>, vector<16x8xf32>, vector<16x8xf32> -> vector<16x8xf32>
    %208 = vector.extract_strided_slice %191 {offsets = [0, 8], sizes = [16, 8], strides = [1, 1]} : vector<16x96xf32> to vector<16x8xf32>
    %209 = vector.extract_strided_slice %191 {offsets = [0, 40], sizes = [16, 8], strides = [1, 1]} : vector<16x96xf32> to vector<16x8xf32>
    %210 = vector.extract_strided_slice %191 {offsets = [0, 72], sizes = [16, 8], strides = [1, 1]} : vector<16x96xf32> to vector<16x8xf32>
    %cst_93 = arith.constant dense<0.000000e+00> : vector<16x16xf32>
    %211 = tpu.matmul %208, %209, %cst_93 {dimension_numbers = #tpu.dot_dimension_numbers<[1], [1], [0], [0], [0, 0, 1, 0], [], []>} : vector<16x8xf32>, vector<16x8xf32>, vector<16x16xf32> -> vector<16x16xf32>
    %212 = arith.addf %211, %3 : vector<16x16xf32>
    %cst_94 = arith.constant dense<0xFF800000> : vector<16xf32>
    %213 = vector.multi_reduction <maximumf>, %212, %cst_94 [1] : vector<16x16xf32> to vector<16xf32>
    %214 = vector.shape_cast %213 : vector<16xf32> to vector<16x1xf32>
    %215 = vector.broadcast %214 : vector<16x1xf32> to vector<16x16xf32>
    %216 = arith.subf %212, %215 : vector<16x16xf32>
    %217 = math.exp %216 : vector<16x16xf32>
    %cst_95 = arith.constant dense<0.000000e+00> : vector<16xf32>
    %218 = vector.multi_reduction <add>, %217, %cst_95 [1] : vector<16x16xf32> to vector<16xf32>
    %219 = vector.shape_cast %218 : vector<16xf32> to vector<16x1xf32>
    %220 = tpu.reciprocal %219 {approx = true} : vector<16x1xf32> -> vector<16x1xf32>
    %221 = vector.broadcast %220 : vector<16x1xf32> to vector<16x16xf32>
    %222 = arith.mulf %217, %221 : vector<16x16xf32>
    %cst_96 = arith.constant dense<0.000000e+00> : vector<16x8xf32>
    %223 = tpu.matmul %222, %210, %cst_96 {dimension_numbers = #tpu.dot_dimension_numbers<[1], [0], [0], [1], [0, 0, 1, 1], [], []>} : vector<16x16xf32>, vector<16x8xf32>, vector<16x8xf32> -> vector<16x8xf32>
    %224 = vector.extract_strided_slice %191 {offsets = [0, 16], sizes = [16, 8], strides = [1, 1]} : vector<16x96xf32> to vector<16x8xf32>
    %225 = vector.extract_strided_slice %191 {offsets = [0, 48], sizes = [16, 8], strides = [1, 1]} : vector<16x96xf32> to vector<16x8xf32>
    %226 = vector.extract_strided_slice %191 {offsets = [0, 80], sizes = [16, 8], strides = [1, 1]} : vector<16x96xf32> to vector<16x8xf32>
    %cst_97 = arith.constant dense<0.000000e+00> : vector<16x16xf32>
    %227 = tpu.matmul %224, %225, %cst_97 {dimension_numbers = #tpu.dot_dimension_numbers<[1], [1], [0], [0], [0, 0, 1, 0], [], []>} : vector<16x8xf32>, vector<16x8xf32>, vector<16x16xf32> -> vector<16x16xf32>
    %228 = arith.addf %227, %3 : vector<16x16xf32>
    %cst_98 = arith.constant dense<0xFF800000> : vector<16xf32>
    %229 = vector.multi_reduction <maximumf>, %228, %cst_98 [1] : vector<16x16xf32> to vector<16xf32>
    %230 = vector.shape_cast %229 : vector<16xf32> to vector<16x1xf32>
    %231 = vector.broadcast %230 : vector<16x1xf32> to vector<16x16xf32>
    %232 = arith.subf %228, %231 : vector<16x16xf32>
    %233 = math.exp %232 : vector<16x16xf32>
    %cst_99 = arith.constant dense<0.000000e+00> : vector<16xf32>
    %234 = vector.multi_reduction <add>, %233, %cst_99 [1] : vector<16x16xf32> to vector<16xf32>
    %235 = vector.shape_cast %234 : vector<16xf32> to vector<16x1xf32>
    %236 = tpu.reciprocal %235 {approx = true} : vector<16x1xf32> -> vector<16x1xf32>
    %237 = vector.broadcast %236 : vector<16x1xf32> to vector<16x16xf32>
    %238 = arith.mulf %233, %237 : vector<16x16xf32>
    %cst_100 = arith.constant dense<0.000000e+00> : vector<16x8xf32>
    %239 = tpu.matmul %238, %226, %cst_100 {dimension_numbers = #tpu.dot_dimension_numbers<[1], [0], [0], [1], [0, 0, 1, 1], [], []>} : vector<16x16xf32>, vector<16x8xf32>, vector<16x8xf32> -> vector<16x8xf32>
    %240 = vector.extract_strided_slice %191 {offsets = [0, 24], sizes = [16, 8], strides = [1, 1]} : vector<16x96xf32> to vector<16x8xf32>
    %241 = vector.extract_strided_slice %191 {offsets = [0, 56], sizes = [16, 8], strides = [1, 1]} : vector<16x96xf32> to vector<16x8xf32>
    %242 = vector.extract_strided_slice %191 {offsets = [0, 88], sizes = [16, 8], strides = [1, 1]} : vector<16x96xf32> to vector<16x8xf32>
    %cst_101 = arith.constant dense<0.000000e+00> : vector<16x16xf32>
    %243 = tpu.matmul %240, %241, %cst_101 {dimension_numbers = #tpu.dot_dimension_numbers<[1], [1], [0], [0], [0, 0, 1, 0], [], []>} : vector<16x8xf32>, vector<16x8xf32>, vector<16x16xf32> -> vector<16x16xf32>
    %244 = arith.addf %243, %3 : vector<16x16xf32>
    %cst_102 = arith.constant dense<0xFF800000> : vector<16xf32>
    %245 = vector.multi_reduction <maximumf>, %244, %cst_102 [1] : vector<16x16xf32> to vector<16xf32>
    %246 = vector.shape_cast %245 : vector<16xf32> to vector<16x1xf32>
    %247 = vector.broadcast %246 : vector<16x1xf32> to vector<16x16xf32>
    %248 = arith.subf %244, %247 : vector<16x16xf32>
    %249 = math.exp %248 : vector<16x16xf32>
    %cst_103 = arith.constant dense<0.000000e+00> : vector<16xf32>
    %250 = vector.multi_reduction <add>, %249, %cst_103 [1] : vector<16x16xf32> to vector<16xf32>
    %251 = vector.shape_cast %250 : vector<16xf32> to vector<16x1xf32>
    %252 = tpu.reciprocal %251 {approx = true} : vector<16x1xf32> -> vector<16x1xf32>
    %253 = vector.broadcast %252 : vector<16x1xf32> to vector<16x16xf32>
    %254 = arith.mulf %249, %253 : vector<16x16xf32>
    %cst_104 = arith.constant dense<0.000000e+00> : vector<16x8xf32>
    %255 = tpu.matmul %254, %242, %cst_104 {dimension_numbers = #tpu.dot_dimension_numbers<[1], [0], [0], [1], [0, 0, 1, 1], [], []>} : vector<16x16xf32>, vector<16x8xf32>, vector<16x8xf32> -> vector<16x8xf32>
    %256 = tpu.concatenate %207, %223, %239, %255 in 1 : vector<16x8xf32>, vector<16x8xf32>, vector<16x8xf32>, vector<16x8xf32> -> vector<16x32xf32>
    %c1_105 = arith.constant 1 : index
    %c0_106 = arith.constant 0 : index
    %c0_107 = arith.constant 0 : index
    %257 = vector.load %arg8[%c1_105, %c0_106, %c0_107] : memref<2x32x32xf32, #tpu.memory_space<vmem>>, vector<1x32x32xf32>
    %258 = vector.shape_cast %257 : vector<1x32x32xf32> to vector<32x32xf32>
    %cst_108 = arith.constant dense<0.000000e+00> : vector<16x32xf32>
    %259 = tpu.matmul %256, %258, %cst_108 {dimension_numbers = #tpu.dot_dimension_numbers<[1], [0], [0], [1], [0, 0, 1, 1], [], []>} : vector<16x32xf32>, vector<32x32xf32>, vector<16x32xf32> -> vector<16x32xf32>
    %260 = arith.addf %158, %259 : vector<16x32xf32>
    %c1_109 = arith.constant 1 : index
    %c0_110 = arith.constant 0 : index
    %c0_111 = arith.constant 0 : index
    %261 = vector.load %arg9[%c1_109, %c0_110, %c0_111] : memref<2x1x32xf32, #tpu.memory_space<vmem>>, vector<1x1x32xf32>
    %262 = vector.shape_cast %261 : vector<1x1x32xf32> to vector<1x32xf32>
    %263 = vector.broadcast %262 : vector<1x32xf32> to vector<16x32xf32>
    %264 = arith.addf %260, %263 : vector<16x32xf32>
    %c1_112 = arith.constant 1 : index
    %c0_113 = arith.constant 0 : index
    %c0_114 = arith.constant 0 : index
    %265 = vector.load %arg10[%c1_112, %c0_113, %c0_114] : memref<2x1x32xf32, #tpu.memory_space<vmem>>, vector<1x1x32xf32>
    %266 = vector.shape_cast %265 : vector<1x1x32xf32> to vector<1x32xf32>
    %c1_115 = arith.constant 1 : index
    %c0_116 = arith.constant 0 : index
    %c0_117 = arith.constant 0 : index
    %267 = vector.load %arg11[%c1_115, %c0_116, %c0_117] : memref<2x1x32xf32, #tpu.memory_space<vmem>>, vector<1x1x32xf32>
    %268 = vector.shape_cast %267 : vector<1x1x32xf32> to vector<1x32xf32>
    %cst_118 = arith.constant dense<0.000000e+00> : vector<16xf32>
    %269 = vector.multi_reduction <add>, %264, %cst_118 [1] : vector<16x32xf32> to vector<16xf32>
    %270 = vector.shape_cast %269 : vector<16xf32> to vector<16x1xf32>
    %cst_119 = arith.constant 3.200000e+01 : f32
    %271 = vector.broadcast %cst_119 : f32 to vector<16x1xf32>
    %272 = arith.divf %270, %271 : vector<16x1xf32>
    %273 = arith.mulf %264, %264 : vector<16x32xf32>
    %cst_120 = arith.constant dense<0.000000e+00> : vector<16xf32>
    %274 = vector.multi_reduction <add>, %273, %cst_120 [1] : vector<16x32xf32> to vector<16xf32>
    %275 = vector.shape_cast %274 : vector<16xf32> to vector<16x1xf32>
    %cst_121 = arith.constant 3.200000e+01 : f32
    %276 = vector.broadcast %cst_121 : f32 to vector<16x1xf32>
    %277 = arith.divf %275, %276 : vector<16x1xf32>
    %278 = arith.mulf %272, %272 : vector<16x1xf32>
    %279 = arith.subf %277, %278 : vector<16x1xf32>
    %280 = vector.broadcast %272 : vector<16x1xf32> to vector<16x32xf32>
    %281 = arith.subf %264, %280 : vector<16x32xf32>
    %cst_122 = arith.constant 9.99999974E-6 : f32
    %282 = vector.broadcast %cst_122 : f32 to vector<16x1xf32>
    %283 = arith.addf %279, %282 : vector<16x1xf32>
    %284 = math.rsqrt %283 : vector<16x1xf32>
    %285 = vector.broadcast %284 : vector<16x1xf32> to vector<16x32xf32>
    %286 = arith.mulf %281, %285 : vector<16x32xf32>
    %287 = vector.broadcast %266 : vector<1x32xf32> to vector<16x32xf32>
    %288 = arith.mulf %286, %287 : vector<16x32xf32>
    %289 = vector.broadcast %268 : vector<1x32xf32> to vector<16x32xf32>
    %290 = arith.addf %288, %289 : vector<16x32xf32>
    %c1_123 = arith.constant 1 : index
    %c0_124 = arith.constant 0 : index
    %c0_125 = arith.constant 0 : index
    %291 = vector.load %arg12[%c1_123, %c0_124, %c0_125] : memref<2x32x128xf32, #tpu.memory_space<vmem>>, vector<1x32x128xf32>
    %292 = vector.shape_cast %291 : vector<1x32x128xf32> to vector<32x128xf32>
    %cst_126 = arith.constant dense<0.000000e+00> : vector<16x128xf32>
    %293 = tpu.matmul %290, %292, %cst_126 {dimension_numbers = #tpu.dot_dimension_numbers<[1], [0], [0], [1], [0, 0, 1, 1], [], []>} : vector<16x32xf32>, vector<32x128xf32>, vector<16x128xf32> -> vector<16x128xf32>
    %c1_127 = arith.constant 1 : index
    %c0_128 = arith.constant 0 : index
    %c0_129 = arith.constant 0 : index
    %294 = vector.load %arg13[%c1_127, %c0_128, %c0_129] : memref<2x1x128xf32, #tpu.memory_space<vmem>>, vector<1x1x128xf32>
    %295 = vector.shape_cast %294 : vector<1x1x128xf32> to vector<1x128xf32>
    %296 = vector.broadcast %295 : vector<1x128xf32> to vector<16x128xf32>
    %297 = arith.addf %293, %296 : vector<16x128xf32>
    %cst_130 = arith.constant 1.702000e+00 : f32
    %298 = vector.broadcast %cst_130 : f32 to vector<16x128xf32>
    %299 = arith.mulf %298, %297 : vector<16x128xf32>
    %300 = arith.negf %299 : vector<16x128xf32>
    %301 = math.exp %300 : vector<16x128xf32>
    %cst_131 = arith.constant 1.000000e+00 : f32
    %302 = vector.broadcast %cst_131 : f32 to vector<16x128xf32>
    %303 = arith.addf %302, %301 : vector<16x128xf32>
    %304 = arith.divf %302, %303 : vector<16x128xf32>
    %305 = arith.mulf %297, %304 : vector<16x128xf32>
    %c1_132 = arith.constant 1 : index
    %c0_133 = arith.constant 0 : index
    %c0_134 = arith.constant 0 : index
    %306 = vector.load %arg14[%c1_132, %c0_133, %c0_134] : memref<2x128x32xf32, #tpu.memory_space<vmem>>, vector<1x128x32xf32>
    %307 = vector.shape_cast %306 : vector<1x128x32xf32> to vector<128x32xf32>
    %cst_135 = arith.constant dense<0.000000e+00> : vector<16x32xf32>
    %308 = tpu.matmul %305, %307, %cst_135 {dimension_numbers = #tpu.dot_dimension_numbers<[1], [0], [0], [1], [0, 0, 1, 1], [], []>} : vector<16x128xf32>, vector<128x32xf32>, vector<16x32xf32> -> vector<16x32xf32>
    %309 = arith.addf %264, %308 : vector<16x32xf32>
    %c1_136 = arith.constant 1 : index
    %c0_137 = arith.constant 0 : index
    %c0_138 = arith.constant 0 : index
    %310 = vector.load %arg15[%c1_136, %c0_137, %c0_138] : memref<2x1x32xf32, #tpu.memory_space<vmem>>, vector<1x1x32xf32>
    %311 = vector.shape_cast %310 : vector<1x1x32xf32> to vector<1x32xf32>
    %312 = vector.broadcast %311 : vector<1x32xf32> to vector<16x32xf32>
    %313 = arith.addf %309, %312 : vector<16x32xf32>
    %c0_139 = arith.constant 0 : index
    %c0_140 = arith.constant 0 : index
    %314 = vector.load %arg20[%c0_139, %c0_140] : memref<16x32xf32, #tpu.memory_space<vmem>>, vector<16x32xf32>
    tpu.vector_store %arg20[%c0_139, %c0_140], %313 {strides = array<i32>} : memref<16x32xf32, #tpu.memory_space<vmem>>, vector<16x32xf32>,
    %c0_141 = arith.constant 0 : index
    %315 = memref.load %arg0[%c0_141] : memref<2xi32, #tpu.memory_space<smem>>
    %316 = arith.index_cast %315 : i32 to index
    %c0_142 = arith.constant 0 : index
    %317 = vector.load %arg20[%316, %c0_142] : memref<16x32xf32, #tpu.memory_space<vmem>>, vector<1x32xf32>
    %c0_143 = arith.constant 0 : index
    %c0_144 = arith.constant 0 : index
    %318 = vector.load %arg21[%c0_143, %c0_144] : memref<2x32xf32, #tpu.memory_space<vmem>>, vector<1x32xf32>
    tpu.vector_store %arg21[%c0_143, %c0_144], %317 {strides = array<i32>} : memref<2x32xf32, #tpu.memory_space<vmem>>, vector<1x32xf32>,
    %c1_145 = arith.constant 1 : index
    %319 = memref.load %arg0[%c1_145] : memref<2xi32, #tpu.memory_space<smem>>
    %320 = arith.index_cast %319 : i32 to index
    %c0_146 = arith.constant 0 : index
    %321 = vector.load %arg20[%320, %c0_146] : memref<16x32xf32, #tpu.memory_space<vmem>>, vector<1x32xf32>
    %c1_147 = arith.constant 1 : index
    %c0_148 = arith.constant 0 : index
    %322 = vector.load %arg21[%c1_147, %c0_148] : memref<2x32xf32, #tpu.memory_space<vmem>>, vector<1x32xf32>
    tpu.vector_store %arg21[%c1_147, %c0_148], %321 {strides = array<i32>} : memref<2x32xf32, #tpu.memory_space<vmem>>, vector<1x32xf32>,
    %c0_149 = arith.constant 0 : index
    %c0_150 = arith.constant 0 : index
    %323 = vector.load %arg21[%c0_149, %c0_150] : memref<2x32xf32, #tpu.memory_space<vmem>>, vector<2x32xf32>
    %c0_151 = arith.constant 0 : index
    %c0_152 = arith.constant 0 : index
    %324 = vector.load %arg16[%c0_151, %c0_152] : memref<1x32xf32, #tpu.memory_space<vmem>>, vector<1x32xf32>
    %c0_153 = arith.constant 0 : index
    %c0_154 = arith.constant 0 : index
    %325 = vector.load %arg17[%c0_153, %c0_154] : memref<1x32xf32, #tpu.memory_space<vmem>>, vector<1x32xf32>
    %cst_155 = arith.constant dense<0.000000e+00> : vector<2xf32>
    %326 = vector.multi_reduction <add>, %323, %cst_155 [1] : vector<2x32xf32> to vector<2xf32>
    %327 = vector.shape_cast %326 : vector<2xf32> to vector<2x1xf32>
    %cst_156 = arith.constant 3.200000e+01 : f32
    %328 = vector.broadcast %cst_156 : f32 to vector<2x1xf32>
    %329 = arith.divf %327, %328 : vector<2x1xf32>
    %330 = arith.mulf %323, %323 : vector<2x32xf32>
    %cst_157 = arith.constant dense<0.000000e+00> : vector<2xf32>
    %331 = vector.multi_reduction <add>, %330, %cst_157 [1] : vector<2x32xf32> to vector<2xf32>
    %332 = vector.shape_cast %331 : vector<2xf32> to vector<2x1xf32>
    %cst_158 = arith.constant 3.200000e+01 : f32
    %333 = vector.broadcast %cst_158 : f32 to vector<2x1xf32>
    %334 = arith.divf %332, %333 : vector<2x1xf32>
    %335 = arith.mulf %329, %329 : vector<2x1xf32>
    %336 = arith.subf %334, %335 : vector<2x1xf32>
    %337 = vector.broadcast %329 : vector<2x1xf32> to vector<2x32xf32>
    %338 = arith.subf %323, %337 : vector<2x32xf32>
    %cst_159 = arith.constant 9.99999974E-6 : f32
    %339 = vector.broadcast %cst_159 : f32 to vector<2x1xf32>
    %340 = arith.addf %336, %339 : vector<2x1xf32>
    %341 = math.rsqrt %340 : vector<2x1xf32>
    %342 = vector.broadcast %341 : vector<2x1xf32> to vector<2x32xf32>
    %343 = arith.mulf %338, %342 : vector<2x32xf32>
    %344 = vector.broadcast %324 : vector<1x32xf32> to vector<2x32xf32>
    %345 = arith.mulf %343, %344 : vector<2x32xf32>
    %346 = vector.broadcast %325 : vector<1x32xf32> to vector<2x32xf32>
    %347 = arith.addf %345, %346 : vector<2x32xf32>
    %c0_160 = arith.constant 0 : index
    %c0_161 = arith.constant 0 : index
    %348 = vector.load %arg18[%c0_160, %c0_161] : memref<32x16xf32, #tpu.memory_space<vmem>>, vector<32x16xf32>
    %cst_162 = arith.constant dense<0.000000e+00> : vector<2x16xf32>
    %349 = tpu.matmul %347, %348, %cst_162 {dimension_numbers = #tpu.dot_dimension_numbers<[1], [0], [0], [1], [0, 0, 1, 1], [], []>} : vector<2x32xf32>, vector<32x16xf32>, vector<2x16xf32> -> vector<2x16xf32>
    %c0_163 = arith.constant 0 : index
    %c0_164 = arith.constant 0 : index
    %350 = vector.load %arg19[%c0_163, %c0_164] : memref<2x16xf32, #tpu.memory_space<vmem>>, vector<2x16xf32>
    tpu.vector_store %arg19[%c0_163, %c0_164], %349 {strides = array<i32>} : memref<2x16xf32, #tpu.memory_space<vmem>>, vector<2x16xf32>,
    return
  }
}

</mosaic_0001>

<llo_original>
// kernel: tpu_custom_call.1
$region0: #{tpu_custom_call.1}
  #allocation0 [shape = 'u32[]', space=smem, size = 0x4, offset = 0x4, fixed_abs, tag = 'smem constant byte address 0x4 - core index']
  #allocation1 [shape = 'u32[72,128]{1,0:T(1,128)}', space=vmem, size = 0x9000, scoped, tag = 'internal scratch']
  #allocation2 [shape = 'f32[16,32]{1,0:T(8,128)}', space=vmem, size = 0x2000, scoped, tag = 'scratch operand']
  #allocation3 [shape = 'f32[2,32]{1,0:T(2,128)}', space=vmem, size = 0x400, scoped, tag = 'scratch operand']
  %s0 = inlined_call_operand.vmem [shape: s32[2], index: 0, kind: input, shape index: {}]
  %s1 = inlined_call_operand.vmem [shape: f32[16,32], index: 1, kind: input, shape index: {}]
  %s2 = inlined_call_operand.vmem [shape: f32[16,32], index: 2, kind: input, shape index: {}]
  %s3 = inlined_call_operand.vmem [shape: f32[16,16], index: 3, kind: input, shape index: {}]
  %s4 = inlined_call_operand.vmem [shape: f32[2,1,32], index: 4, kind: input, shape index: {}]
  %s5 = inlined_call_operand.vmem [shape: f32[2,1,32], index: 5, kind: input, shape index: {}]
  %s6 = inlined_call_operand.vmem [shape: f32[2,32,96], index: 6, kind: input, shape index: {}]
  %s7 = inlined_call_operand.vmem [shape: f32[2,1,96], index: 7, kind: input, shape index: {}]
  %s8 = inlined_call_operand.vmem [shape: f32[2,32,32], index: 8, kind: input, shape index: {}]
  %s9 = inlined_call_operand.vmem [shape: f32[2,1,32], index: 9, kind: input, shape index: {}]
  %s10 = inlined_call_operand.vmem [shape: f32[2,1,32], index: 10, kind: input, shape index: {}]
  %s11 = inlined_call_operand.vmem [shape: f32[2,1,32], index: 11, kind: input, shape index: {}]
  %s12 = inlined_call_operand.vmem [shape: f32[2,32,128], index: 12, kind: input, shape index: {}]
  %s13 = inlined_call_operand.vmem [shape: f32[2,1,128], index: 13, kind: input, shape index: {}]
  %s14 = inlined_call_operand.vmem [shape: f32[2,128,32], index: 14, kind: input, shape index: {}]
  %s15 = inlined_call_operand.vmem [shape: f32[2,1,32], index: 15, kind: input, shape index: {}]
  %s16 = inlined_call_operand.vmem [shape: f32[1,32], index: 16, kind: input, shape index: {}]
  %s17 = inlined_call_operand.vmem [shape: f32[1,32], index: 17, kind: input, shape index: {}]
  %s18 = inlined_call_operand.vmem [shape: f32[32,16], index: 18, kind: input, shape index: {}]
  %s19 = inlined_call_operand.hbm [shape: f32[2,16], index: 19, kind: output, shape index: {}]
  %s20 = sld [smem:[#allocation0]]
  $region90: #{tpu_custom_call.1} parent=0
    _
  %s22 = ssub.s32 1, %s20
  %s23 = scalar_select 0, %s22, %s20
  $region1: #{tpu_custom_call.1} parent=0
    #allocation4 [shape = 'u8[512]{0}', space=smem, size = 0x200, scoped, tag = 'input window, operand 0, single buffered']
    #allocation5 [shape = 's32[1]{0}', space=sflag, size = 0x4, scoped, tag = 'scoped memory for tpu_custom_call.1']
    #allocation6 [shape = 's32[1]{0}', space=sflag, size = 0x4, scoped, tag = 'scoped memory for tpu_custom_call.1']
    #allocation7 [shape = 'u8[1024]{0}', space=vmem, size = 0x400, scoped, tag = 'output window, operand 0, single buffered']
    %24 = vsyncpa [#allocation6], 0
    %25 = vsyncpa [#allocation5], 0
    // Predicated region
    $region2: #{tpu_custom_call.1} parent=1 // pred_check
      _
    $region3: #{tpu_custom_call.1} parent=1 // pred_check_branch
      %27 = sbr.rel (0) target = $region5
    $region4: #{tpu_custom_call.1} parent=1 // pred_region
      %29 = vsyncadd [#allocation6], 0
      %s31 = sshll.u32 %s0, 4
      %s32 = int_to_ptr.vmem [resolvable:$true] %s31
      %34 = dma.vmem_to_smem %s32, 16, [#allocation4], [#allocation6]
    $region5: #{tpu_custom_call.1} parent=1 // pred_fallthru
      _
    // Predicated region
    $region6: #{tpu_custom_call.1} parent=1 // pred_check
      _
    $region7: #{tpu_custom_call.1} parent=1 // pred_check_branch
      %36 = sbr.rel (0) target = $region9
    $region8: #{tpu_custom_call.1} parent=1 // pred_region
      _
    $region9: #{tpu_custom_call.1} parent=1 // pred_fallthru
      _
    // Predicated region
    $region10: #{tpu_custom_call.1} parent=1 // pred_check
      _
    $region11: #{tpu_custom_call.1} parent=1 // pred_check_branch
      %38 = sbr.rel (0) target = $region13
    $region12: #{tpu_custom_call.1} parent=1 // pred_region
      _
    $region13: #{tpu_custom_call.1} parent=1 // pred_fallthru
      _
    // Predicated region
    $region14: #{tpu_custom_call.1} parent=1 // pred_check
      _
    $region15: #{tpu_custom_call.1} parent=1 // pred_check_branch
      %40 = sbr.rel (0) target = $region17
    $region16: #{tpu_custom_call.1} parent=1 // pred_region
      _
    $region17: #{tpu_custom_call.1} parent=1 // pred_fallthru
      _
    // Predicated region
    $region18: #{tpu_custom_call.1} parent=1 // pred_check
      _
    $region19: #{tpu_custom_call.1} parent=1 // pred_check_branch
      %42 = sbr.rel (0) target = $region21
    $region20: #{tpu_custom_call.1} parent=1 // pred_region
      _
    $region21: #{tpu_custom_call.1} parent=1 // pred_fallthru
      _
    // Predicated region
    $region22: #{tpu_custom_call.1} parent=1 // pred_check
      _
    $region23: #{tpu_custom_call.1} parent=1 // pred_check_branch
      %44 = sbr.rel (0) target = $region25
    $region24: #{tpu_custom_call.1} parent=1 // pred_region
      _
    $region25: #{tpu_custom_call.1} parent=1 // pred_fallthru
      _
    // Predicated region
    $region26: #{tpu_custom_call.1} parent=1 // pred_check
      _
    $region27: #{tpu_custom_call.1} parent=1 // pred_check_branch
      %46 = sbr.rel (0) target = $region29
    $region28: #{tpu_custom_call.1} parent=1 // pred_region
      _
    $region29: #{tpu_custom_call.1} parent=1 // pred_fallthru
      _
    // Predicated region
    $region30: #{tpu_custom_call.1} parent=1 // pred_check
      _
    $region31: #{tpu_custom_call.1} parent=1 // pred_check_branch
      %48 = sbr.rel (0) target = $region33
    $region32: #{tpu_custom_call.1} parent=1 // pred_region
      _
    $region33: #{tpu_custom_call.1} parent=1 // pred_fallthru
      _
    // Predicated region
    $region34: #{tpu_custom_call.1} parent=1 // pred_check
      _
    $region35: #{tpu_custom_call.1} parent=1 // pred_check_branch
      %50 = sbr.rel (0) target = $region37
    $region36: #{tpu_custom_call.1} parent=1 // pred_region
      _
    $region37: #{tpu_custom_call.1} parent=1 // pred_fallthru
      _
    // Predicated region
    $region38: #{tpu_custom_call.1} parent=1 // pred_check
      _
    $region39: #{tpu_custom_call.1} parent=1 // pred_check_branch
      %52 = sbr.rel (0) target = $region41
    $region40: #{tpu_custom_call.1} parent=1 // pred_region
      _
    $region41: #{tpu_custom_call.1} parent=1 // pred_fallthru
      _
    // Predicated region
    $region42: #{tpu_custom_call.1} parent=1 // pred_check
      _
    $region43: #{tpu_custom_call.1} parent=1 // pred_check_branch
      %54 = sbr.rel (0) target = $region45
    $region44: #{tpu_custom_call.1} parent=1 // pred_region
      _
    $region45: #{tpu_custom_call.1} parent=1 // pred_fallthru
      _
    // Predicated region
    $region46: #{tpu_custom_call.1} parent=1 // pred_check
      _
    $region47: #{tpu_custom_call.1} parent=1 // pred_check_branch
      %56 = sbr.rel (0) target = $region49
    $region48: #{tpu_custom_call.1} parent=1 // pred_region
      _
    $region49: #{tpu_custom_call.1} parent=1 // pred_fallthru
      _
    // Predicated region
    $region50: #{tpu_custom_call.1} parent=1 // pred_check
      _
    $region51: #{tpu_custom_call.1} parent=1 // pred_check_branch
      %58 = sbr.rel (0) target = $region53
    $region52: #{tpu_custom_call.1} parent=1 // pred_region
      _
    $region53: #{tpu_custom_call.1} parent=1 // pred_fallthru
      _
    // Predicated region
    $region54: #{tpu_custom_call.1} parent=1 // pred_check
      _
    $region55: #{tpu_custom_call.1} parent=1 // pred_check_branch
      %60 = sbr.rel (0) target = $region57
    $region56: #{tpu_custom_call.1} parent=1 // pred_region
      _
    $region57: #{tpu_custom_call.1} parent=1 // pred_fallthru
      _
    // Predicated region
    $region58: #{tpu_custom_call.1} parent=1 // pred_check
      _
    $region59: #{tpu_custom_call.1} parent=1 // pred_check_branch
      %62 = sbr.rel (0) target = $region61
    $region60: #{tpu_custom_call.1} parent=1 // pred_region
      _
    $region61: #{tpu_custom_call.1} parent=1 // pred_fallthru
      _
    // Predicated region
    $region62: #{tpu_custom_call.1} parent=1 // pred_check
      _
    $region63: #{tpu_custom_call.1} parent=1 // pred_check_branch
      %64 = sbr.rel (0) target = $region65
    $region64: #{tpu_custom_call.1} parent=1 // pred_region
      _
    $region65: #{tpu_custom_call.1} parent=1 // pred_fallthru
      _
    // Predicated region
    $region66: #{tpu_custom_call.1} parent=1 // pred_check
      _
    $region67: #{tpu_custom_call.1} parent=1 // pred_check_branch
      %66 = sbr.rel (0) target = $region69
    $region68: #{tpu_custom_call.1} parent=1 // pred_region
      _
    $region69: #{tpu_custom_call.1} parent=1 // pred_fallthru
      _
    // Predicated region
    $region70: #{tpu_custom_call.1} parent=1 // pred_check
      _
    $region71: #{tpu_custom_call.1} parent=1 // pred_check_branch
      %68 = sbr.rel (0) target = $region73
    $region72: #{tpu_custom_call.1} parent=1 // pred_region
      _
    $region73: #{tpu_custom_call.1} parent=1 // pred_fallthru
      _
    // Predicated region
    $region74: #{tpu_custom_call.1} parent=1 // pred_check
      _
    $region75: #{tpu_custom_call.1} parent=1 // pred_check_branch
      %70 = sbr.rel (0) target = $region77
    $region76: #{tpu_custom_call.1} parent=1 // pred_region
      _
    $region77: #{tpu_custom_call.1} parent=1 // pred_fallthru
      _
    // Predicated region
    $region78: #{tpu_custom_call.1} parent=1 // pred_check
      _
    $region79: #{tpu_custom_call.1} parent=1 // pred_check_branch
      %72 = sbr.rel (0) target = $region81
    $region80: #{tpu_custom_call.1} parent=1 // pred_region
      %74 = dma.done [#allocation6], 16
    $region81: #{tpu_custom_call.1} parent=1 // pred_fallthru
      _
    %75 = sfence
    %v76 = vld [vmem:[%s1] sm:$0xff]
    %v77 = vld [vmem:[%s1 + $0x8] sm:$0xff]
    %v78 = vld [vmem:[%s2] sm:$0xff]
    %v79 = vld [vmem:[%s2 + $0x8] sm:$0xff]
    %v80 = vadd.f32 %v76, %v78
    %v81 = vadd.f32 %v77, %v79
    %v82 = vld [vmem:[%s3] sm:$0xff]
    %v83 = vld [vmem:[%s3 + $0x8] sm:$0xff]
    %v84 = vld [vmem:[%s4] sm:$0x1]
    %v85 = vld [vmem:[%s5] sm:$0x1]
    %vm86 = vcmask 261120
    %v87 = vsel %vm86, %v80, 0.0
    %88 = vadd.xlane.f32.xlu0 %v87
    %v89 = vpop.xlane.xlu0 %88
    %v90 = vsel %vm86, %v81, 0.0
    %91 = vadd.xlane.f32.xlu0 %v90
    %v92 = vpop.xlane.xlu0 %91
    %v93 = vrcp.pop 32.0
    %v94 = vmul.f32 32.0, %v93
    %v95 = vsub.f32 1.0, %v94
    %v96 = vmul.f32 %v93, %v95
    %v97 = vadd.f32 %v93, %v96
    %vm98 = vweird.f32 %v93
    %v99 = vsel %vm98, %v93, %v97
    %v100 = vmul.f32 %v89, %v99
    %v101 = vmul.f32 %v92, %v99
    %v102 = vmul.f32 %v80, %v80
    %v103 = vmul.f32 %v81, %v81
    %v104 = vsel %vm86, %v102, 0.0
    %105 = vadd.xlane.f32.xlu0 %v104
    %v106 = vpop.xlane.xlu0 %105
    %v107 = vsel %vm86, %v103, 0.0
    %108 = vadd.xlane.f32.xlu0 %v107
    %v109 = vpop.xlane.xlu0 %108
    %v110 = vmul.f32 %v106, %v99
    %v111 = vmul.f32 %v109, %v99
    %v112 = vmul.f32 %v100, %v100
    %v113 = vmul.f32 %v101, %v101
    %v114 = vsub.f32 %v110, %v112
    %v115 = vsub.f32 %v111, %v113
    %v116 = vsub.f32 %v80, %v100
    %v117 = vsub.f32 %v81, %v101
    %v118 = vadd.f32 %v114, 1e-05
    %v119 = vadd.f32 %v115, 1e-05
    %v120 = vrsqrt.pop %v118
    %v121 = vmul.f32 %v120, %v118
    %v122 = vmul.f32 %v121, %v120
    %v123 = vmul.f32 0.5, %v122
    %v124 = vsub.f32 1.5, %v123
    %v125 = vmul.f32 %v120, %v124
    %vm126 = vweird.f32 %v118
    %vm127 = vweird.f32 %v120
    %vm128 = vmor %vm126, %vm127
    %v129 = vsel %vm128, %v120, %v125
    %v130 = vrsqrt.pop %v119
    %v131 = vmul.f32 %v130, %v119
    %v132 = vmul.f32 %v131, %v130
    %v133 = vmul.f32 0.5, %v132
    %v134 = vsub.f32 1.5, %v133
    %v135 = vmul.f32 %v130, %v134
    %vm136 = vweird.f32 %v119
    %vm137 = vweird.f32 %v130
    %vm138 = vmor %vm136, %vm137
    %v139 = vsel %vm138, %v130, %v135
    %v140 = vmul.f32 %v116, %v129
    %v141 = vmul.f32 %v117, %v139
    %v143 = vperm.slane %v84, 0
    %v145 = vmul.f32 %v140, %v143
    %v146 = vmul.f32 %v141, %v143
    %v148 = vperm.slane %v85, 0
    %v150 = vadd.f32 %v145, %v148
    %v151 = vadd.f32 %v146, %v148
    %v152 = vld [vmem:[%s6] sm:$0xff]
    %v153 = vld [vmem:[%s6 + $0x8] sm:$0xff]
    %v154 = vld [vmem:[%s6 + $0x10] sm:$0xff]
    %v155 = vld [vmem:[%s6 + $0x18] sm:$0xff]
    %v156 = vld [vmem:[%s7] sm:$0x1]
    %v158 = vperm.slane %v156, 0
    %v161 = vsel %vm86, %v150, 0
    %v164 = vsel %vm86, %v151, 0
    %166 = vmatpush.msra.mxu0 0.0
    %167 = vmatpush.msra.mxu0 0.0
    %168 = vmatpush.msra.mxu0 0.0
    %169 = vmatpush.msra.mxu0 0.0
    %170 = vmatpush.msra.mxu0 0.0
    %171 = vmatpush.msra.mxu0 0.0
    %172 = vmatpush.msra.mxu0 0.0
    %173 = vmatpush.msra.mxu0 0.0
    %174 = vmatpush.msra.mxu0 0.0
    %175 = vmatpush.msra.mxu0 0.0
    %176 = vmatpush.msra.mxu0 0.0
    %177 = vmatpush.msra.mxu0 0.0
    %178 = vmatpush.msra.mxu0 %v155
    %179 = vmatpush.msra.mxu0 %v154
    %180 = vmatpush.msra.mxu0 %v153
    %181 = vmatpush.msra.mxu0 %v152
    %182 = vmatmul.f32.gmra.mxu0 %v161
    %v183 = vpop.f32.mrf.mxu0
    %v184 = vadd.f32 %v158, %v183
    %185 = vmatmul.f32.gmra.mxu0 %v164
    %v186 = vpop.f32.mrf.mxu0
    %v187 = vadd.f32 %v158, %v186
    %188 = vdwg.mxu0
    %191 = vrot.lane.b32.xlu0 %v184, 96
    %v192 = vpop.permute.xlu0 %191
    %193 = vrot.lane.b32.xlu0 %v187, 96
    %v194 = vpop.permute.xlu0 %193
    %vm195 = vcmask 64512
    %v196 = vsel %vm195, %v184, 0
    %v198 = vsel %vm195, %v187, 0
    %v200 = vsel %vm195, %v192, 0
    %v202 = vsel %vm195, %v194, 0
    %204 = vmatpush.xpose.msra.mxu0 0.0
    %205 = vmatpush.xpose.msra.mxu0 0.0
    %206 = vmatpush.xpose.msra.mxu0 0.0
    %207 = vmatpush.xpose.msra.mxu0 0.0
    %208 = vmatpush.xpose.msra.mxu0 0.0
    %209 = vmatpush.xpose.msra.mxu0 0.0
    %210 = vmatpush.xpose.msra.mxu0 0.0
    %211 = vmatpush.xpose.msra.mxu0 0.0
    %212 = vmatpush.xpose.msra.mxu0 0.0
    %213 = vmatpush.xpose.msra.mxu0 0.0
    %214 = vmatpush.xpose.msra.mxu0 0.0
    %215 = vmatpush.xpose.msra.mxu0 0.0
    %216 = vmatpush.xpose.msra.mxu0 0.0
    %217 = vmatpush.xpose.msra.mxu0 0.0
    %218 = vmatpush.xpose.msra.mxu0 %v202
    %219 = vmatpush.xpose.msra.mxu0 %v200
    %220 = vmatmul.f32.gmra.mxu0 %v196
    %v221 = vpop.f32.mrf.mxu0
    %v222 = vadd.f32 %v82, %v221
    %223 = vmatmul.f32.gmra.mxu0 %v198
    %v224 = vpop.f32.mrf.mxu0
    %v225 = vadd.f32 %v83, %v224
    %226 = vdwg.mxu0
    %vm227 = vcmask 130048
    %v228 = vsel %vm227, %v222, -inf
    %229 = vmax.xlane.f32.xlu0 %v228
    %v230 = vpop.xlane.xlu0 %229
    %v231 = vsel %vm227, %v225, -inf
    %232 = vmax.xlane.f32.xlu0 %v231
    %v233 = vpop.xlane.xlu0 %232
    %v234 = vsub.f32 %v222, %v230
    %v235 = vsub.f32 %v225, %v233
    %v236 = vmul.f32 %v234, 1.442695
    %v237 = vpow.pop %v236
    %v238 = vmul.f32 %v235, 1.442695
    %v239 = vpow.pop %v238
    %v240 = vsel %vm227, %v237, 0.0
    %241 = vadd.xlane.f32.xlu0 %v240
    %v242 = vpop.xlane.xlu0 %241
    %v243 = vsel %vm227, %v239, 0.0
    %244 = vadd.xlane.f32.xlu0 %v243
    %v245 = vpop.xlane.xlu0 %244
    %v246 = vrcp.pop %v242
    %v247 = vrcp.pop %v245
    %v248 = vmul.f32 %v237, %v246
    %v249 = vmul.f32 %v239, %v247
    %250 = vrot.lane.b32.xlu0 %v184, 64
    %v251 = vpop.permute.xlu0 %250
    %252 = vrot.lane.b32.xlu0 %v187, 64
    %v253 = vpop.permute.xlu0 %252
    %v257 = vsel %vm227, %v248, 0
    %v260 = vsel %vm227, %v249, 0
    %262 = vmatpush.msra.mxu0 0.0
    %263 = vmatpush.msra.mxu0 0.0
    %264 = vmatpush.msra.mxu0 0.0
    %265 = vmatpush.msra.mxu0 0.0
    %266 = vmatpush.msra.mxu0 0.0
    %267 = vmatpush.msra.mxu0 0.0
    %268 = vmatpush.msra.mxu0 0.0
    %269 = vmatpush.msra.mxu0 0.0
    %270 = vmatpush.msra.mxu0 0.0
    %271 = vmatpush.msra.mxu0 0.0
    %272 = vmatpush.msra.mxu0 0.0
    %273 = vmatpush.msra.mxu0 0.0
    %274 = vmatpush.msra.mxu0 0.0
    %275 = vmatpush.msra.mxu0 0.0
    %276 = vmatpush.msra.mxu0 %v253
    %277 = vmatpush.msra.mxu0 %v251
    %278 = vmatmul.f32.gmra.mxu0 %v257
    %v279 = vpop.f32.mrf.mxu0
    %v280 = vadd.f32 0.0, %v279
    %281 = vmatmul.f32.gmra.mxu0 %v260
    %v282 = vpop.f32.mrf.mxu0
    %v283 = vadd.f32 0.0, %v282
    %284 = vdwg.mxu0
    %285 = vrot.lane.b32.xlu0 %v184, 120
    %v286 = vpop.permute.xlu0 %285
    %287 = vrot.lane.b32.xlu0 %v187, 120
    %v288 = vpop.permute.xlu0 %287
    %289 = vrot.lane.b32.xlu0 %v184, 88
    %v290 = vpop.permute.xlu0 %289
    %291 = vrot.lane.b32.xlu0 %v187, 88
    %v292 = vpop.permute.xlu0 %291
    %v293 = vsel %vm195, %v286, 0
    %v295 = vsel %vm195, %v288, 0
    %v297 = vsel %vm195, %v290, 0
    %v299 = vsel %vm195, %v292, 0
    %301 = vmatpush.xpose.msra.mxu0 0.0
    %302 = vmatpush.xpose.msra.mxu0 0.0
    %303 = vmatpush.xpose.msra.mxu0 0.0
    %304 = vmatpush.xpose.msra.mxu0 0.0
    %305 = vmatpush.xpose.msra.mxu0 0.0
    %306 = vmatpush.xpose.msra.mxu0 0.0
    %307 = vmatpush.xpose.msra.mxu0 0.0
    %308 = vmatpush.xpose.msra.mxu0 0.0
    %309 = vmatpush.xpose.msra.mxu0 0.0
    %310 = vmatpush.xpose.msra.mxu0 0.0
    %311 = vmatpush.xpose.msra.mxu0 0.0
    %312 = vmatpush.xpose.msra.mxu0 0.0
    %313 = vmatpush.xpose.msra.mxu0 0.0
    %314 = vmatpush.xpose.msra.mxu0 0.0
    %315 = vmatpush.xpose.msra.mxu0 %v299
    %316 = vmatpush.xpose.msra.mxu0 %v297
    %317 = vmatmul.f32.gmra.mxu0 %v293
    %v318 = vpop.f32.mrf.mxu0
    %v319 = vadd.f32 %v82, %v318
    %320 = vmatmul.f32.gmra.mxu0 %v295
    %v321 = vpop.f32.mrf.mxu0
    %v322 = vadd.f32 %v83, %v321
    %323 = vdwg.mxu0
    %v324 = vsel %vm227, %v319, -inf
    %325 = vmax.xlane.f32.xlu0 %v324
    %v326 = vpop.xlane.xlu0 %325
    %v327 = vsel %vm227, %v322, -inf
    %328 = vmax.xlane.f32.xlu0 %v327
    %v329 = vpop.xlane.xlu0 %328
    %v330 = vsub.f32 %v319, %v326
    %v331 = vsub.f32 %v322, %v329
    %v332 = vmul.f32 %v330, 1.442695
    %v333 = vpow.pop %v332
    %v334 = vmul.f32 %v331, 1.442695
    %v335 = vpow.pop %v334
    %v336 = vsel %vm227, %v333, 0.0
    %337 = vadd.xlane.f32.xlu0 %v336
    %v338 = vpop.xlane.xlu0 %337
    %v339 = vsel %vm227, %v335, 0.0
    %340 = vadd.xlane.f32.xlu0 %v339
    %v341 = vpop.xlane.xlu0 %340
    %v342 = vrcp.pop %v338
    %v343 = vrcp.pop %v341
    %v344 = vmul.f32 %v333, %v342
    %v345 = vmul.f32 %v335, %v343
    %346 = vrot.lane.b32.xlu0 %v184, 56
    %v347 = vpop.permute.xlu0 %346
    %348 = vrot.lane.b32.xlu0 %v187, 56
    %v349 = vpop.permute.xlu0 %348
    %v353 = vsel %vm227, %v344, 0
    %v356 = vsel %vm227, %v345, 0
    %358 = vmatpush.msra.mxu0 0.0
    %359 = vmatpush.msra.mxu0 0.0
    %360 = vmatpush.msra.mxu0 0.0
    %361 = vmatpush.msra.mxu0 0.0
    %362 = vmatpush.msra.mxu0 0.0
    %363 = vmatpush.msra.mxu0 0.0
    %364 = vmatpush.msra.mxu0 0.0
    %365 = vmatpush.msra.mxu0 0.0
    %366 = vmatpush.msra.mxu0 0.0
    %367 = vmatpush.msra.mxu0 0.0
    %368 = vmatpush.msra.mxu0 0.0
    %369 = vmatpush.msra.mxu0 0.0
    %370 = vmatpush.msra.mxu0 0.0
    %371 = vmatpush.msra.mxu0 0.0
    %372 = vmatpush.msra.mxu0 %v349
    %373 = vmatpush.msra.mxu0 %v347
    %374 = vmatmul.f32.gmra.mxu0 %v353
    %v375 = vpop.f32.mrf.mxu0
    %v376 = vadd.f32 0.0, %v375
    %377 = vmatmul.f32.gmra.mxu0 %v356
    %v378 = vpop.f32.mrf.mxu0
    %v379 = vadd.f32 0.0, %v378
    %380 = vdwg.mxu0
    %381 = vrot.lane.b32.xlu0 %v184, 112
    %v382 = vpop.permute.xlu0 %381
    %383 = vrot.lane.b32.xlu0 %v187, 112
    %v384 = vpop.permute.xlu0 %383
    %385 = vrot.lane.b32.xlu0 %v184, 80
    %v386 = vpop.permute.xlu0 %385
    %387 = vrot.lane.b32.xlu0 %v187, 80
    %v388 = vpop.permute.xlu0 %387
    %v389 = vsel %vm195, %v382, 0
    %v391 = vsel %vm195, %v384, 0
    %v393 = vsel %vm195, %v386, 0
    %v395 = vsel %vm195, %v388, 0
    %397 = vmatpush.xpose.msra.mxu0 0.0
    %398 = vmatpush.xpose.msra.mxu0 0.0
    %399 = vmatpush.xpose.msra.mxu0 0.0
    %400 = vmatpush.xpose.msra.mxu0 0.0
    %401 = vmatpush.xpose.msra.mxu0 0.0
    %402 = vmatpush.xpose.msra.mxu0 0.0
    %403 = vmatpush.xpose.msra.mxu0 0.0
    %404 = vmatpush.xpose.msra.mxu0 0.0
    %405 = vmatpush.xpose.msra.mxu0 0.0
    %406 = vmatpush.xpose.msra.mxu0 0.0
    %407 = vmatpush.xpose.msra.mxu0 0.0
    %408 = vmatpush.xpose.msra.mxu0 0.0
    %409 = vmatpush.xpose.msra.mxu0 0.0
    %410 = vmatpush.xpose.msra.mxu0 0.0
    %411 = vmatpush.xpose.msra.mxu0 %v395
    %412 = vmatpush.xpose.msra.mxu0 %v393
    %413 = vmatmul.f32.gmra.mxu0 %v389
    %v414 = vpop.f32.mrf.mxu0
    %v415 = vadd.f32 %v82, %v414
    %416 = vmatmul.f32.gmra.mxu0 %v391
    %v417 = vpop.f32.mrf.mxu0
    %v418 = vadd.f32 %v83, %v417
    %419 = vdwg.mxu0
    %v420 = vsel %vm227, %v415, -inf
    %421 = vmax.xlane.f32.xlu0 %v420
    %v422 = vpop.xlane.xlu0 %421
    %v423 = vsel %vm227, %v418, -inf
    %424 = vmax.xlane.f32.xlu0 %v423
    %v425 = vpop.xlane.xlu0 %424
    %v426 = vsub.f32 %v415, %v422
    %v427 = vsub.f32 %v418, %v425
    %v428 = vmul.f32 %v426, 1.442695
    %v429 = vpow.pop %v428
    %v430 = vmul.f32 %v427, 1.442695
    %v431 = vpow.pop %v430
    %v432 = vsel %vm227, %v429, 0.0
    %433 = vadd.xlane.f32.xlu0 %v432
    %v434 = vpop.xlane.xlu0 %433
    %v435 = vsel %vm227, %v431, 0.0
    %436 = vadd.xlane.f32.xlu0 %v435
    %v437 = vpop.xlane.xlu0 %436
    %v438 = vrcp.pop %v434
    %v439 = vrcp.pop %v437
    %v440 = vmul.f32 %v429, %v438
    %v441 = vmul.f32 %v431, %v439
    %442 = vrot.lane.b32.xlu0 %v184, 48
    %v443 = vpop.permute.xlu0 %442
    %444 = vrot.lane.b32.xlu0 %v187, 48
    %v445 = vpop.permute.xlu0 %444
    %v449 = vsel %vm227, %v440, 0
    %v452 = vsel %vm227, %v441, 0
    %454 = vmatpush.msra.mxu0 0.0
    %455 = vmatpush.msra.mxu0 0.0
    %456 = vmatpush.msra.mxu0 0.0
    %457 = vmatpush.msra.mxu0 0.0
    %458 = vmatpush.msra.mxu0 0.0
    %459 = vmatpush.msra.mxu0 0.0
    %460 = vmatpush.msra.mxu0 0.0
    %461 = vmatpush.msra.mxu0 0.0
    %462 = vmatpush.msra.mxu0 0.0
    %463 = vmatpush.msra.mxu0 0.0
    %464 = vmatpush.msra.mxu0 0.0
    %465 = vmatpush.msra.mxu0 0.0
    %466 = vmatpush.msra.mxu0 0.0
    %467 = vmatpush.msra.mxu0 0.0
    %468 = vmatpush.msra.mxu0 %v445
    %469 = vmatpush.msra.mxu0 %v443
    %470 = vmatmul.f32.gmra.mxu0 %v449
    %v471 = vpop.f32.mrf.mxu0
    %v472 = vadd.f32 0.0, %v471
    %473 = vmatmul.f32.gmra.mxu0 %v452
    %v474 = vpop.f32.mrf.mxu0
    %v475 = vadd.f32 0.0, %v474
    %476 = vdwg.mxu0
    %477 = vrot.lane.b32.xlu0 %v184, 104
    %v478 = vpop.permute.xlu0 %477
    %479 = vrot.lane.b32.xlu0 %v187, 104
    %v480 = vpop.permute.xlu0 %479
    %481 = vrot.lane.b32.xlu0 %v184, 72
    %v482 = vpop.permute.xlu0 %481
    %483 = vrot.lane.b32.xlu0 %v187, 72
    %v484 = vpop.permute.xlu0 %483
    %v485 = vsel %vm195, %v478, 0
    %v487 = vsel %vm195, %v480, 0
    %v489 = vsel %vm195, %v482, 0
    %v491 = vsel %vm195, %v484, 0
    %493 = vmatpush.xpose.msra.mxu0 0.0
    %494 = vmatpush.xpose.msra.mxu0 0.0
    %495 = vmatpush.xpose.msra.mxu0 0.0
    %496 = vmatpush.xpose.msra.mxu0 0.0
    %497 = vmatpush.xpose.msra.mxu0 0.0
    %498 = vmatpush.xpose.msra.mxu0 0.0
    %499 = vmatpush.xpose.msra.mxu0 0.0
    %500 = vmatpush.xpose.msra.mxu0 0.0
    %501 = vmatpush.xpose.msra.mxu0 0.0
    %502 = vmatpush.xpose.msra.mxu0 0.0
    %503 = vmatpush.xpose.msra.mxu0 0.0
    %504 = vmatpush.xpose.msra.mxu0 0.0
    %505 = vmatpush.xpose.msra.mxu0 0.0
    %506 = vmatpush.xpose.msra.mxu0 0.0
    %507 = vmatpush.xpose.msra.mxu0 %v491
    %508 = vmatpush.xpose.msra.mxu0 %v489
    %509 = vmatmul.f32.gmra.mxu0 %v485
    %v510 = vpop.f32.mrf.mxu0
    %v511 = vadd.f32 %v82, %v510
    %512 = vmatmul.f32.gmra.mxu0 %v487
    %v513 = vpop.f32.mrf.mxu0
    %v514 = vadd.f32 %v83, %v513
    %515 = vdwg.mxu0
    %v516 = vsel %vm227, %v511, -inf
    %517 = vmax.xlane.f32.xlu0 %v516
    %v518 = vpop.xlane.xlu0 %517
    %v519 = vsel %vm227, %v514, -inf
    %520 = vmax.xlane.f32.xlu0 %v519
    %v521 = vpop.xlane.xlu0 %520
    %v522 = vsub.f32 %v511, %v518
    %v523 = vsub.f32 %v514, %v521
    %v524 = vmul.f32 %v522, 1.442695
    %v525 = vpow.pop %v524
    %v526 = vmul.f32 %v523, 1.442695
    %v527 = vpow.pop %v526
    %v528 = vsel %vm227, %v525, 0.0
    %529 = vadd.xlane.f32.xlu0 %v528
    %v530 = vpop.xlane.xlu0 %529
    %v531 = vsel %vm227, %v527, 0.0
    %532 = vadd.xlane.f32.xlu0 %v531
    %v533 = vpop.xlane.xlu0 %532
    %v534 = vrcp.pop %v530
    %v535 = vrcp.pop %v533
    %v536 = vmul.f32 %v525, %v534
    %v537 = vmul.f32 %v527, %v535
    %538 = vrot.lane.b32.xlu0 %v184, 40
    %v539 = vpop.permute.xlu0 %538
    %540 = vrot.lane.b32.xlu0 %v187, 40
    %v541 = vpop.permute.xlu0 %540
    %v545 = vsel %vm227, %v536, 0
    %v548 = vsel %vm227, %v537, 0
    %550 = vmatpush.msra.mxu0 0.0
    %551 = vmatpush.msra.mxu0 0.0
    %552 = vmatpush.msra.mxu0 0.0
    %553 = vmatpush.msra.mxu0 0.0
    %554 = vmatpush.msra.mxu0 0.0
    %555 = vmatpush.msra.mxu0 0.0
    %556 = vmatpush.msra.mxu0 0.0
    %557 = vmatpush.msra.mxu0 0.0
    %558 = vmatpush.msra.mxu0 0.0
    %559 = vmatpush.msra.mxu0 0.0
    %560 = vmatpush.msra.mxu0 0.0
    %561 = vmatpush.msra.mxu0 0.0
    %562 = vmatpush.msra.mxu0 0.0
    %563 = vmatpush.msra.mxu0 0.0
    %564 = vmatpush.msra.mxu0 %v541
    %565 = vmatpush.msra.mxu0 %v539
    %566 = vmatmul.f32.gmra.mxu0 %v545
    %v567 = vpop.f32.mrf.mxu0
    %v568 = vadd.f32 0.0, %v567
    %569 = vmatmul.f32.gmra.mxu0 %v548
    %v570 = vpop.f32.mrf.mxu0
    %v571 = vadd.f32 0.0, %v570
    %572 = vdwg.mxu0
    %575 = vrot.lane.b32.xlu0 %v376, 8
    %v576 = vpop.permute.xlu0 %575
    %577 = vrot.lane.b32.xlu0 %v379, 8
    %v578 = vpop.permute.xlu0 %577
    %583 = vrot.lane.b32.xlu0 %v472, 16
    %v584 = vpop.permute.xlu0 %583
    %585 = vrot.lane.b32.xlu0 %v475, 16
    %v586 = vpop.permute.xlu0 %585
    %591 = vrot.lane.b32.xlu0 %v568, 24
    %v592 = vpop.permute.xlu0 %591
    %593 = vrot.lane.b32.xlu0 %v571, 24
    %v594 = vpop.permute.xlu0 %593
    %v597 = vsel %vm195, %v280, %v576
    %v598 = vsel %vm195, %v283, %v578
    %v599 = vsel %vm227, %v597, %v584
    %v600 = vsel %vm227, %v598, %v586
    %vm601 = vcmask 195584
    %v602 = vsel %vm601, %v599, %v592
    %v603 = vsel %vm601, %v600, %v594
    %v604 = vld [vmem:[%s8] sm:$0xff]
    %v605 = vld [vmem:[%s8 + $0x8] sm:$0xff]
    %v606 = vld [vmem:[%s8 + $0x10] sm:$0xff]
    %v607 = vld [vmem:[%s8 + $0x18] sm:$0xff]
    %v609 = vsel %vm86, %v602, 0
    %v612 = vsel %vm86, %v603, 0
    %614 = vmatpush.msra.mxu0 0.0
    %615 = vmatpush.msra.mxu0 0.0
    %616 = vmatpush.msra.mxu0 0.0
    %617 = vmatpush.msra.mxu0 0.0
    %618 = vmatpush.msra.mxu0 0.0
    %619 = vmatpush.msra.mxu0 0.0
    %620 = vmatpush.msra.mxu0 0.0
    %621 = vmatpush.msra.mxu0 0.0
    %622 = vmatpush.msra.mxu0 0.0
    %623 = vmatpush.msra.mxu0 0.0
    %624 = vmatpush.msra.mxu0 0.0
    %625 = vmatpush.msra.mxu0 0.0
    %626 = vmatpush.msra.mxu0 %v607
    %627 = vmatpush.msra.mxu0 %v606
    %628 = vmatpush.msra.mxu0 %v605
    %629 = vmatpush.msra.mxu0 %v604
    %630 = vmatmul.f32.gmra.mxu0 %v609
    %v631 = vpop.f32.mrf.mxu0
    %v632 = vadd.f32 0.0, %v631
    %633 = vmatmul.f32.gmra.mxu0 %v612
    %v634 = vpop.f32.mrf.mxu0
    %v635 = vadd.f32 0.0, %v634
    %636 = vdwg.mxu0
    %v637 = vadd.f32 %v80, %v632
    %v638 = vadd.f32 %v81, %v635
    %v639 = vld [vmem:[%s9] sm:$0x1]
    %v641 = vperm.slane %v639, 0
    %v643 = vadd.f32 %v637, %v641
    %v644 = vadd.f32 %v638, %v641
    %v645 = vld [vmem:[%s10] sm:$0x1]
    %v646 = vld [vmem:[%s11] sm:$0x1]
    %v647 = vsel %vm86, %v643, 0.0
    %648 = vadd.xlane.f32.xlu0 %v647
    %v649 = vpop.xlane.xlu0 %648
    %v650 = vsel %vm86, %v644, 0.0
    %651 = vadd.xlane.f32.xlu0 %v650
    %v652 = vpop.xlane.xlu0 %651
    %v653 = vmul.f32 %v649, %v99
    %v654 = vmul.f32 %v652, %v99
    %v655 = vmul.f32 %v643, %v643
    %v656 = vmul.f32 %v644, %v644
    %v657 = vsel %vm86, %v655, 0.0
    %658 = vadd.xlane.f32.xlu0 %v657
    %v659 = vpop.xlane.xlu0 %658
    %v660 = vsel %vm86, %v656, 0.0
    %661 = vadd.xlane.f32.xlu0 %v660
    %v662 = vpop.xlane.xlu0 %661
    %v663 = vmul.f32 %v659, %v99
    %v664 = vmul.f32 %v662, %v99
    %v665 = vmul.f32 %v653, %v653
    %v666 = vmul.f32 %v654, %v654
    %v667 = vsub.f32 %v663, %v665
    %v668 = vsub.f32 %v664, %v666
    %v669 = vsub.f32 %v643, %v653
    %v670 = vsub.f32 %v644, %v654
    %v671 = vadd.f32 %v667, 1e-05
    %v672 = vadd.f32 %v668, 1e-05
    %v673 = vrsqrt.pop %v671
    %v674 = vmul.f32 %v673, %v671
    %v675 = vmul.f32 %v674, %v673
    %v676 = vmul.f32 0.5, %v675
    %v677 = vsub.f32 1.5, %v676
    %v678 = vmul.f32 %v673, %v677
    %vm679 = vweird.f32 %v671
    %vm680 = vweird.f32 %v673
    %vm681 = vmor %vm679, %vm680
    %v682 = vsel %vm681, %v673, %v678
    %v683 = vrsqrt.pop %v672
    %v684 = vmul.f32 %v683, %v672
    %v685 = vmul.f32 %v684, %v683
    %v686 = vmul.f32 0.5, %v685
    %v687 = vsub.f32 1.5, %v686
    %v688 = vmul.f32 %v683, %v687
    %vm689 = vweird.f32 %v672
    %vm690 = vweird.f32 %v683
    %vm691 = vmor %vm689, %vm690
    %v692 = vsel %vm691, %v683, %v688
    %v693 = vmul.f32 %v669, %v682
    %v694 = vmul.f32 %v670, %v692
    %v696 = vperm.slane %v645, 0
    %v698 = vmul.f32 %v693, %v696
    %v699 = vmul.f32 %v694, %v696
    %v701 = vperm.slane %v646, 0
    %v703 = vadd.f32 %v698, %v701
    %v704 = vadd.f32 %v699, %v701
    %v705 = vld [vmem:[%s12] sm:$0xff]
    %v706 = vld [vmem:[%s12 + $0x8] sm:$0xff]
    %v707 = vld [vmem:[%s12 + $0x10] sm:$0xff]
    %v708 = vld [vmem:[%s12 + $0x18] sm:$0xff]
    %v709 = vld [vmem:[%s13] sm:$0x1]
    %v711 = vperm.slane %v709, 0
    %v714 = vsel %vm86, %v703, 0
    %v717 = vsel %vm86, %v704, 0
    %719 = vmatpush.msra.mxu0 0.0
    %720 = vmatpush.msra.mxu0 0.0
    %721 = vmatpush.msra.mxu0 0.0
    %722 = vmatpush.msra.mxu0 0.0
    %723 = vmatpush.msra.mxu0 0.0
    %724 = vmatpush.msra.mxu0 0.0
    %725 = vmatpush.msra.mxu0 0.0
    %726 = vmatpush.msra.mxu0 0.0
    %727 = vmatpush.msra.mxu0 0.0
    %728 = vmatpush.msra.mxu0 0.0
    %729 = vmatpush.msra.mxu0 0.0
    %730 = vmatpush.msra.mxu0 0.0
    %731 = vmatpush.msra.mxu0 %v708
    %732 = vmatpush.msra.mxu0 %v707
    %733 = vmatpush.msra.mxu0 %v706
    %734 = vmatpush.msra.mxu0 %v705
    %735 = vmatmul.f32.gmra.mxu0 %v714
    %v736 = vpop.f32.mrf.mxu0
    %v737 = vadd.f32 %v711, %v736
    %738 = vmatmul.f32.gmra.mxu0 %v717
    %v739 = vpop.f32.mrf.mxu0
    %v740 = vadd.f32 %v711, %v739
    %741 = vdwg.mxu0
    %v742 = vmul.f32 %v737, 1.702
    %v743 = vmul.f32 %v740, 1.702
    %v744 = vxor.u32 %v742, 2147483648
    %v745 = vxor.u32 %v743, 2147483648
    %v746 = vmul.f32 %v744, 1.442695
    %v747 = vpow.pop %v746
    %v748 = vmul.f32 %v745, 1.442695
    %v749 = vpow.pop %v748
    %v750 = vadd.f32 %v747, 1.0
    %v751 = vadd.f32 %v749, 1.0
    %v752 = vrcp.pop %v750
    %v753 = vmul.f32 %v750, %v752
    %v754 = vsub.f32 1.0, %v753
    %v755 = vmul.f32 %v752, %v754
    %v756 = vadd.f32 %v752, %v755
    %vm757 = vweird.f32 %v750
    %vm758 = vweird.f32 %v752
    %vm759 = vmor %vm757, %vm758
    %v760 = vsel %vm759, %v752, %v756
    %v761 = vand.u32 2147483647, %v750
    %vm762 = vcmp.eq.f32.partialorder %v761, 8.507059e+37
    %v763 = vand.u32 %v750, 2147483648
    %v764 = vor.u32 1.1754944e-38, %v763
    %v765 = vsel %vm762, %v764, %v760
    %v766 = vmul.f32 1.0, %v765
    %v767 = vrcp.pop %v751
    %v768 = vmul.f32 %v751, %v767
    %v769 = vsub.f32 1.0, %v768
    %v770 = vmul.f32 %v767, %v769
    %v771 = vadd.f32 %v767, %v770
    %vm772 = vweird.f32 %v751
    %vm773 = vweird.f32 %v767
    %vm774 = vmor %vm772, %vm773
    %v775 = vsel %vm774, %v767, %v771
    %v776 = vand.u32 2147483647, %v751
    %vm777 = vcmp.eq.f32.partialorder %v776, 8.507059e+37
    %v778 = vand.u32 %v751, 2147483648
    %v779 = vor.u32 1.1754944e-38, %v778
    %v780 = vsel %vm777, %v779, %v775
    %v781 = vmul.f32 1.0, %v780
    %v782 = vmul.f32 %v737, %v766
    %v783 = vmul.f32 %v740, %v781
    %v784 = vld [vmem:[%s14] sm:$0xff]
    %v785 = vld [vmem:[%s14 + $0x8] sm:$0xff]
    %v786 = vld [vmem:[%s14 + $0x10] sm:$0xff]
    %v787 = vld [vmem:[%s14 + $0x18] sm:$0xff]
    %v788 = vld [vmem:[%s14 + $0x20] sm:$0xff]
    %v789 = vld [vmem:[%s14 + $0x28] sm:$0xff]
    %v790 = vld [vmem:[%s14 + $0x30] sm:$0xff]
    %v791 = vld [vmem:[%s14 + $0x38] sm:$0xff]
    %v792 = vld [vmem:[%s14 + $0x40] sm:$0xff]
    %v793 = vld [vmem:[%s14 + $0x48] sm:$0xff]
    %v794 = vld [vmem:[%s14 + $0x50] sm:$0xff]
    %v795 = vld [vmem:[%s14 + $0x58] sm:$0xff]
    %v796 = vld [vmem:[%s14 + $0x60] sm:$0xff]
    %v797 = vld [vmem:[%s14 + $0x68] sm:$0xff]
    %v798 = vld [vmem:[%s14 + $0x70] sm:$0xff]
    %v799 = vld [vmem:[%s14 + $0x78] sm:$0xff]
    %800 = vmatpush.msra.mxu0 %v799
    %801 = vmatpush.msra.mxu0 %v798
    %802 = vmatpush.msra.mxu0 %v797
    %803 = vmatpush.msra.mxu0 %v796
    %804 = vmatpush.msra.mxu0 %v795
    %805 = vmatpush.msra.mxu0 %v794
    %806 = vmatpush.msra.mxu0 %v793
    %807 = vmatpush.msra.mxu0 %v792
    %808 = vmatpush.msra.mxu0 %v791
    %809 = vmatpush.msra.mxu0 %v790
    %810 = vmatpush.msra.mxu0 %v789
    %811 = vmatpush.msra.mxu0 %v788
    %812 = vmatpush.msra.mxu0 %v787
    %813 = vmatpush.msra.mxu0 %v786
    %814 = vmatpush.msra.mxu0 %v785
    %815 = vmatpush.msra.mxu0 %v784
    %816 = vmatmul.f32.gmra.mxu0 %v782
    %v817 = vpop.f32.mrf.mxu0
    %v818 = vadd.f32 0.0, %v817
    %819 = vmatmul.f32.gmra.mxu0 %v783
    %v820 = vpop.f32.mrf.mxu0
    %v821 = vadd.f32 0.0, %v820
    %822 = vdwg.mxu0
    %v823 = vadd.f32 %v643, %v818
    %v824 = vadd.f32 %v644, %v821
    %v825 = vld [vmem:[%s15] sm:$0x1]
    %v827 = vperm.slane %v825, 0
    %v829 = vadd.f32 %v823, %v827
    %v830 = vadd.f32 %v824, %v827
    %s831 = scalar_lea.vmem %s4, 1
    %v832 = vld [vmem:[%s831] sm:$0x1]
    %s833 = scalar_lea.vmem %s5, 1
    %v834 = vld [vmem:[%s833] sm:$0x1]
    %v835 = vsel %vm86, %v829, 0.0
    %836 = vadd.xlane.f32.xlu0 %v835
    %v837 = vpop.xlane.xlu0 %836
    %v838 = vsel %vm86, %v830, 0.0
    %839 = vadd.xlane.f32.xlu0 %v838
    %v840 = vpop.xlane.xlu0 %839
    %v841 = vmul.f32 %v837, %v99
    %v842 = vmul.f32 %v840, %v99
    %v843 = vmul.f32 %v829, %v829
    %v844 = vmul.f32 %v830, %v830
    %v845 = vsel %vm86, %v843, 0.0
    %846 = vadd.xlane.f32.xlu0 %v845
    %v847 = vpop.xlane.xlu0 %846
    %v848 = vsel %vm86, %v844, 0.0
    %849 = vadd.xlane.f32.xlu0 %v848
    %v850 = vpop.xlane.xlu0 %849
    %v851 = vmul.f32 %v847, %v99
    %v852 = vmul.f32 %v850, %v99
    %v853 = vmul.f32 %v841, %v841
    %v854 = vmul.f32 %v842, %v842
    %v855 = vsub.f32 %v851, %v853
    %v856 = vsub.f32 %v852, %v854
    %v857 = vsub.f32 %v829, %v841
    %v858 = vsub.f32 %v830, %v842
    %v859 = vadd.f32 %v855, 1e-05
    %v860 = vadd.f32 %v856, 1e-05
    %v861 = vrsqrt.pop %v859
    %v862 = vmul.f32 %v861, %v859
    %v863 = vmul.f32 %v862, %v861
    %v864 = vmul.f32 0.5, %v863
    %v865 = vsub.f32 1.5, %v864
    %v866 = vmul.f32 %v861, %v865
    %vm867 = vweird.f32 %v859
    %vm868 = vweird.f32 %v861
    %vm869 = vmor %vm867, %vm868
    %v870 = vsel %vm869, %v861, %v866
    %v871 = vrsqrt.pop %v860
    %v872 = vmul.f32 %v871, %v860
    %v873 = vmul.f32 %v872, %v871
    %v874 = vmul.f32 0.5, %v873
    %v875 = vsub.f32 1.5, %v874
    %v876 = vmul.f32 %v871, %v875
    %vm877 = vweird.f32 %v860
    %vm878 = vweird.f32 %v871
    %vm879 = vmor %vm877, %vm878
    %v880 = vsel %vm879, %v871, %v876
    %v881 = vmul.f32 %v857, %v870
    %v882 = vmul.f32 %v858, %v880
    %v884 = vperm.slane %v832, 0
    %v886 = vmul.f32 %v881, %v884
    %v887 = vmul.f32 %v882, %v884
    %v889 = vperm.slane %v834, 0
    %v891 = vadd.f32 %v886, %v889
    %v892 = vadd.f32 %v887, %v889
    %s893 = scalar_lea.vmem %s6, 32
    %v894 = vld [vmem:[%s893] sm:$0xff]
    %v895 = vld [vmem:[%s893 + $0x8] sm:$0xff]
    %v896 = vld [vmem:[%s893 + $0x10] sm:$0xff]
    %v897 = vld [vmem:[%s893 + $0x18] sm:$0xff]
    %s898 = scalar_lea.vmem %s7, 1
    %v899 = vld [vmem:[%s898] sm:$0x1]
    %v901 = vperm.slane %v899, 0
    %v904 = vsel %vm86, %v891, 0
    %v907 = vsel %vm86, %v892, 0
    %909 = vmatpush.msra.mxu0 0.0
    %910 = vmatpush.msra.mxu0 0.0
    %911 = vmatpush.msra.mxu0 0.0
    %912 = vmatpush.msra.mxu0 0.0
    %913 = vmatpush.msra.mxu0 0.0
    %914 = vmatpush.msra.mxu0 0.0
    %915 = vmatpush.msra.mxu0 0.0
    %916 = vmatpush.msra.mxu0 0.0
    %917 = vmatpush.msra.mxu0 0.0
    %918 = vmatpush.msra.mxu0 0.0
    %919 = vmatpush.msra.mxu0 0.0
    %920 = vmatpush.msra.mxu0 0.0
    %921 = vmatpush.msra.mxu0 %v897
    %922 = vmatpush.msra.mxu0 %v896
    %923 = vmatpush.msra.mxu0 %v895
    %924 = vmatpush.msra.mxu0 %v894
    %925 = vmatmul.f32.gmra.mxu0 %v904
    %v926 = vpop.f32.mrf.mxu0
    %v927 = vadd.f32 %v901, %v926
    %928 = vmatmul.f32.gmra.mxu0 %v907
    %v929 = vpop.f32.mrf.mxu0
    %v930 = vadd.f32 %v901, %v929
    %931 = vdwg.mxu0
    %934 = vrot.lane.b32.xlu0 %v927, 96
    %v935 = vpop.permute.xlu0 %934
    %936 = vrot.lane.b32.xlu0 %v930, 96
    %v937 = vpop.permute.xlu0 %936
    %v938 = vsel %vm195, %v927, 0
    %v940 = vsel %vm195, %v930, 0
    %v942 = vsel %vm195, %v935, 0
    %v944 = vsel %vm195, %v937, 0
    %946 = vmatpush.xpose.msra.mxu0 0.0
    %947 = vmatpush.xpose.msra.mxu0 0.0
    %948 = vmatpush.xpose.msra.mxu0 0.0
    %949 = vmatpush.xpose.msra.mxu0 0.0
    %950 = vmatpush.xpose.msra.mxu0 0.0
    %951 = vmatpush.xpose.msra.mxu0 0.0
    %952 = vmatpush.xpose.msra.mxu0 0.0
    %953 = vmatpush.xpose.msra.mxu0 0.0
    %954 = vmatpush.xpose.msra.mxu0 0.0
    %955 = vmatpush.xpose.msra.mxu0 0.0
    %956 = vmatpush.xpose.msra.mxu0 0.0
    %957 = vmatpush.xpose.msra.mxu0 0.0
    %958 = vmatpush.xpose.msra.mxu0 0.0
    %959 = vmatpush.xpose.msra.mxu0 0.0
    %960 = vmatpush.xpose.msra.mxu0 %v944
    %961 = vmatpush.xpose.msra.mxu0 %v942
    %962 = vmatmul.f32.gmra.mxu0 %v938
    %v963 = vpop.f32.mrf.mxu0
    %v964 = vadd.f32 %v82, %v963
    %965 = vmatmul.f32.gmra.mxu0 %v940
    %v966 = vpop.f32.mrf.mxu0
    %v967 = vadd.f32 %v83, %v966
    %968 = vdwg.mxu0
    %v969 = vsel %vm227, %v964, -inf
    %970 = vmax.xlane.f32.xlu0 %v969
    %v971 = vpop.xlane.xlu0 %970
    %v972 = vsel %vm227, %v967, -inf
    %973 = vmax.xlane.f32.xlu0 %v972
    %v974 = vpop.xlane.xlu0 %973
    %v975 = vsub.f32 %v964, %v971
    %v976 = vsub.f32 %v967, %v974
    %v977 = vmul.f32 %v975, 1.442695
    %v978 = vpow.pop %v977
    %v979 = vmul.f32 %v976, 1.442695
    %v980 = vpow.pop %v979
    %v981 = vsel %vm227, %v978, 0.0
    %982 = vadd.xlane.f32.xlu0 %v981
    %v983 = vpop.xlane.xlu0 %982
    %v984 = vsel %vm227, %v980, 0.0
    %985 = vadd.xlane.f32.xlu0 %v984
    %v986 = vpop.xlane.xlu0 %985
    %v987 = vrcp.pop %v983
    %v988 = vrcp.pop %v986
    %v989 = vmul.f32 %v978, %v987
    %v990 = vmul.f32 %v980, %v988
    %991 = vrot.lane.b32.xlu0 %v927, 64
    %v992 = vpop.permute.xlu0 %991
    %993 = vrot.lane.b32.xlu0 %v930, 64
    %v994 = vpop.permute.xlu0 %993
    %v998 = vsel %vm227, %v989, 0
    %v1001 = vsel %vm227, %v990, 0
    %1003 = vmatpush.msra.mxu0 0.0
    %1004 = vmatpush.msra.mxu0 0.0
    %1005 = vmatpush.msra.mxu0 0.0
    %1006 = vmatpush.msra.mxu0 0.0
    %1007 = vmatpush.msra.mxu0 0.0
    %1008 = vmatpush.msra.mxu0 0.0
    %1009 = vmatpush.msra.mxu0 0.0
    %1010 = vmatpush.msra.mxu0 0.0
    %1011 = vmatpush.msra.mxu0 0.0
    %1012 = vmatpush.msra.mxu0 0.0
    %1013 = vmatpush.msra.mxu0 0.0
    %1014 = vmatpush.msra.mxu0 0.0
    %1015 = vmatpush.msra.mxu0 0.0
    %1016 = vmatpush.msra.mxu0 0.0
    %1017 = vmatpush.msra.mxu0 %v994
    %1018 = vmatpush.msra.mxu0 %v992
    %1019 = vmatmul.f32.gmra.mxu0 %v998
    %v1020 = vpop.f32.mrf.mxu0
    %v1021 = vadd.f32 0.0, %v1020
    %1022 = vmatmul.f32.gmra.mxu0 %v1001
    %v1023 = vpop.f32.mrf.mxu0
    %v1024 = vadd.f32 0.0, %v1023
    %1025 = vdwg.mxu0
    %1026 = vrot.lane.b32.xlu0 %v927, 120
    %v1027 = vpop.permute.xlu0 %1026
    %1028 = vrot.lane.b32.xlu0 %v930, 120
    %v1029 = vpop.permute.xlu0 %1028
    %1030 = vrot.lane.b32.xlu0 %v927, 88
    %v1031 = vpop.permute.xlu0 %1030
    %1032 = vrot.lane.b32.xlu0 %v930, 88
    %v1033 = vpop.permute.xlu0 %1032
    %v1034 = vsel %vm195, %v1027, 0
    %v1036 = vsel %vm195, %v1029, 0
    %v1038 = vsel %vm195, %v1031, 0
    %v1040 = vsel %vm195, %v1033, 0
    %1042 = vmatpush.xpose.msra.mxu0 0.0
    %1043 = vmatpush.xpose.msra.mxu0 0.0
    %1044 = vmatpush.xpose.msra.mxu0 0.0
    %1045 = vmatpush.xpose.msra.mxu0 0.0
    %1046 = vmatpush.xpose.msra.mxu0 0.0
    %1047 = vmatpush.xpose.msra.mxu0 0.0
    %1048 = vmatpush.xpose.msra.mxu0 0.0
    %1049 = vmatpush.xpose.msra.mxu0 0.0
    %1050 = vmatpush.xpose.msra.mxu0 0.0
    %1051 = vmatpush.xpose.msra.mxu0 0.0
    %1052 = vmatpush.xpose.msra.mxu0 0.0
    %1053 = vmatpush.xpose.msra.mxu0 0.0
    %1054 = vmatpush.xpose.msra.mxu0 0.0
    %1055 = vmatpush.xpose.msra.mxu0 0.0
    %1056 = vmatpush.xpose.msra.mxu0 %v1040
    %1057 = vmatpush.xpose.msra.mxu0 %v1038
    %1058 = vmatmul.f32.gmra.mxu0 %v1034
    %v1059 = vpop.f32.mrf.mxu0
    %v1060 = vadd.f32 %v82, %v1059
    %1061 = vmatmul.f32.gmra.mxu0 %v1036
    %v1062 = vpop.f32.mrf.mxu0
    %v1063 = vadd.f32 %v83, %v1062
    %1064 = vdwg.mxu0
    %v1065 = vsel %vm227, %v1060, -inf
    %1066 = vmax.xlane.f32.xlu0 %v1065
    %v1067 = vpop.xlane.xlu0 %1066
    %v1068 = vsel %vm227, %v1063, -inf
    %1069 = vmax.xlane.f32.xlu0 %v1068
    %v1070 = vpop.xlane.xlu0 %1069
    %v1071 = vsub.f32 %v1060, %v1067
    %v1072 = vsub.f32 %v1063, %v1070
    %v1073 = vmul.f32 %v1071, 1.442695
    %v1074 = vpow.pop %v1073
    %v1075 = vmul.f32 %v1072, 1.442695
    %v1076 = vpow.pop %v1075
    %v1077 = vsel %vm227, %v1074, 0.0
    %1078 = vadd.xlane.f32.xlu0 %v1077
    %v1079 = vpop.xlane.xlu0 %1078
    %v1080 = vsel %vm227, %v1076, 0.0
    %1081 = vadd.xlane.f32.xlu0 %v1080
    %v1082 = vpop.xlane.xlu0 %1081
    %v1083 = vrcp.pop %v1079
    %v1084 = vrcp.pop %v1082
    %v1085 = vmul.f32 %v1074, %v1083
    %v1086 = vmul.f32 %v1076, %v1084
    %1087 = vrot.lane.b32.xlu0 %v927, 56
    %v1088 = vpop.permute.xlu0 %1087
    %1089 = vrot.lane.b32.xlu0 %v930, 56
    %v1090 = vpop.permute.xlu0 %1089
    %v1094 = vsel %vm227, %v1085, 0
    %v1097 = vsel %vm227, %v1086, 0
    %1099 = vmatpush.msra.mxu0 0.0
    %1100 = vmatpush.msra.mxu0 0.0
    %1101 = vmatpush.msra.mxu0 0.0
    %1102 = vmatpush.msra.mxu0 0.0
    %1103 = vmatpush.msra.mxu0 0.0
    %1104 = vmatpush.msra.mxu0 0.0
    %1105 = vmatpush.msra.mxu0 0.0
    %1106 = vmatpush.msra.mxu0 0.0
    %1107 = vmatpush.msra.mxu0 0.0
    %1108 = vmatpush.msra.mxu0 0.0
    %1109 = vmatpush.msra.mxu0 0.0
    %1110 = vmatpush.msra.mxu0 0.0
    %1111 = vmatpush.msra.mxu0 0.0
    %1112 = vmatpush.msra.mxu0 0.0
    %1113 = vmatpush.msra.mxu0 %v1090
    %1114 = vmatpush.msra.mxu0 %v1088
    %1115 = vmatmul.f32.gmra.mxu0 %v1094
    %v1116 = vpop.f32.mrf.mxu0
    %v1117 = vadd.f32 0.0, %v1116
    %1118 = vmatmul.f32.gmra.mxu0 %v1097
    %v1119 = vpop.f32.mrf.mxu0
    %v1120 = vadd.f32 0.0, %v1119
    %1121 = vdwg.mxu0
    %1122 = vrot.lane.b32.xlu0 %v927, 112
    %v1123 = vpop.permute.xlu0 %1122
    %1124 = vrot.lane.b32.xlu0 %v930, 112
    %v1125 = vpop.permute.xlu0 %1124
    %1126 = vrot.lane.b32.xlu0 %v927, 80
    %v1127 = vpop.permute.xlu0 %1126
    %1128 = vrot.lane.b32.xlu0 %v930, 80
    %v1129 = vpop.permute.xlu0 %1128
    %v1130 = vsel %vm195, %v1123, 0
    %v1132 = vsel %vm195, %v1125, 0
    %v1134 = vsel %vm195, %v1127, 0
    %v1136 = vsel %vm195, %v1129, 0
    %1138 = vmatpush.xpose.msra.mxu0 0.0
    %1139 = vmatpush.xpose.msra.mxu0 0.0
    %1140 = vmatpush.xpose.msra.mxu0 0.0
    %1141 = vmatpush.xpose.msra.mxu0 0.0
    %1142 = vmatpush.xpose.msra.mxu0 0.0
    %1143 = vmatpush.xpose.msra.mxu0 0.0
    %1144 = vmatpush.xpose.msra.mxu0 0.0
    %1145 = vmatpush.xpose.msra.mxu0 0.0
    %1146 = vmatpush.xpose.msra.mxu0 0.0
    %1147 = vmatpush.xpose.msra.mxu0 0.0
    %1148 = vmatpush.xpose.msra.mxu0 0.0
    %1149 = vmatpush.xpose.msra.mxu0 0.0
    %1150 = vmatpush.xpose.msra.mxu0 0.0
    %1151 = vmatpush.xpose.msra.mxu0 0.0
    %1152 = vmatpush.xpose.msra.mxu0 %v1136
    %1153 = vmatpush.xpose.msra.mxu0 %v1134
    %1154 = vmatmul.f32.gmra.mxu0 %v1130
    %v1155 = vpop.f32.mrf.mxu0
    %v1156 = vadd.f32 %v82, %v1155
    %1157 = vmatmul.f32.gmra.mxu0 %v1132
    %v1158 = vpop.f32.mrf.mxu0
    %v1159 = vadd.f32 %v83, %v1158
    %1160 = vdwg.mxu0
    %v1161 = vsel %vm227, %v1156, -inf
    %1162 = vmax.xlane.f32.xlu0 %v1161
    %v1163 = vpop.xlane.xlu0 %1162
    %v1164 = vsel %vm227, %v1159, -inf
    %1165 = vmax.xlane.f32.xlu0 %v1164
    %v1166 = vpop.xlane.xlu0 %1165
    %v1167 = vsub.f32 %v1156, %v1163
    %v1168 = vsub.f32 %v1159, %v1166
    %v1169 = vmul.f32 %v1167, 1.442695
    %v1170 = vpow.pop %v1169
    %v1171 = vmul.f32 %v1168, 1.442695
    %v1172 = vpow.pop %v1171
    %v1173 = vsel %vm227, %v1170, 0.0
    %1174 = vadd.xlane.f32.xlu0 %v1173
    %v1175 = vpop.xlane.xlu0 %1174
    %v1176 = vsel %vm227, %v1172, 0.0
    %1177 = vadd.xlane.f32.xlu0 %v1176
    %v1178 = vpop.xlane.xlu0 %1177
    %v1179 = vrcp.pop %v1175
    %v1180 = vrcp.pop %v1178
    %v1181 = vmul.f32 %v1170, %v1179
    %v1182 = vmul.f32 %v1172, %v1180
    %1183 = vrot.lane.b32.xlu0 %v927, 48
    %v1184 = vpop.permute.xlu0 %1183
    %1185 = vrot.lane.b32.xlu0 %v930, 48
    %v1186 = vpop.permute.xlu0 %1185
    %v1190 = vsel %vm227, %v1181, 0
    %v1193 = vsel %vm227, %v1182, 0
    %1195 = vmatpush.msra.mxu0 0.0
    %1196 = vmatpush.msra.mxu0 0.0
    %1197 = vmatpush.msra.mxu0 0.0
    %1198 = vmatpush.msra.mxu0 0.0
    %1199 = vmatpush.msra.mxu0 0.0
    %1200 = vmatpush.msra.mxu0 0.0
    %1201 = vmatpush.msra.mxu0 0.0
    %1202 = vmatpush.msra.mxu0 0.0
    %1203 = vmatpush.msra.mxu0 0.0
    %1204 = vmatpush.msra.mxu0 0.0
    %1205 = vmatpush.msra.mxu0 0.0
    %1206 = vmatpush.msra.mxu0 0.0
    %1207 = vmatpush.msra.mxu0 0.0
    %1208 = vmatpush.msra.mxu0 0.0
    %1209 = vmatpush.msra.mxu0 %v1186
    %1210 = vmatpush.msra.mxu0 %v1184
    %1211 = vmatmul.f32.gmra.mxu0 %v1190
    %v1212 = vpop.f32.mrf.mxu0
    %v1213 = vadd.f32 0.0, %v1212
    %1214 = vmatmul.f32.gmra.mxu0 %v1193
    %v1215 = vpop.f32.mrf.mxu0
    %v1216 = vadd.f32 0.0, %v1215
    %1217 = vdwg.mxu0
    %1218 = vrot.lane.b32.xlu0 %v927, 104
    %v1219 = vpop.permute.xlu0 %1218
    %1220 = vrot.lane.b32.xlu0 %v930, 104
    %v1221 = vpop.permute.xlu0 %1220
    %1222 = vrot.lane.b32.xlu0 %v927, 72
    %v1223 = vpop.permute.xlu0 %1222
    %1224 = vrot.lane.b32.xlu0 %v930, 72
    %v1225 = vpop.permute.xlu0 %1224
    %v1226 = vsel %vm195, %v1219, 0
    %v1228 = vsel %vm195, %v1221, 0
    %v1230 = vsel %vm195, %v1223, 0
    %v1232 = vsel %vm195, %v1225, 0
    %1234 = vmatpush.xpose.msra.mxu0 0.0
    %1235 = vmatpush.xpose.msra.mxu0 0.0
    %1236 = vmatpush.xpose.msra.mxu0 0.0
    %1237 = vmatpush.xpose.msra.mxu0 0.0
    %1238 = vmatpush.xpose.msra.mxu0 0.0
    %1239 = vmatpush.xpose.msra.mxu0 0.0
    %1240 = vmatpush.xpose.msra.mxu0 0.0
    %1241 = vmatpush.xpose.msra.mxu0 0.0
    %1242 = vmatpush.xpose.msra.mxu0 0.0
    %1243 = vmatpush.xpose.msra.mxu0 0.0
    %1244 = vmatpush.xpose.msra.mxu0 0.0
    %1245 = vmatpush.xpose.msra.mxu0 0.0
    %1246 = vmatpush.xpose.msra.mxu0 0.0
    %1247 = vmatpush.xpose.msra.mxu0 0.0
    %1248 = vmatpush.xpose.msra.mxu0 %v1232
    %1249 = vmatpush.xpose.msra.mxu0 %v1230
    %1250 = vmatmul.f32.gmra.mxu0 %v1226
    %v1251 = vpop.f32.mrf.mxu0
    %v1252 = vadd.f32 %v82, %v1251
    %1253 = vmatmul.f32.gmra.mxu0 %v1228
    %v1254 = vpop.f32.mrf.mxu0
    %v1255 = vadd.f32 %v83, %v1254
    %1256 = vdwg.mxu0
    %v1257 = vsel %vm227, %v1252, -inf
    %1258 = vmax.xlane.f32.xlu0 %v1257
    %v1259 = vpop.xlane.xlu0 %1258
    %v1260 = vsel %vm227, %v1255, -inf
    %1261 = vmax.xlane.f32.xlu0 %v1260
    %v1262 = vpop.xlane.xlu0 %1261
    %v1263 = vsub.f32 %v1252, %v1259
    %v1264 = vsub.f32 %v1255, %v1262
    %v1265 = vmul.f32 %v1263, 1.442695
    %v1266 = vpow.pop %v1265
    %v1267 = vmul.f32 %v1264, 1.442695
    %v1268 = vpow.pop %v1267
    %v1269 = vsel %vm227, %v1266, 0.0
    %1270 = vadd.xlane.f32.xlu0 %v1269
    %v1271 = vpop.xlane.xlu0 %1270
    %v1272 = vsel %vm227, %v1268, 0.0
    %1273 = vadd.xlane.f32.xlu0 %v1272
    %v1274 = vpop.xlane.xlu0 %1273
    %v1275 = vrcp.pop %v1271
    %v1276 = vrcp.pop %v1274
    %v1277 = vmul.f32 %v1266, %v1275
    %v1278 = vmul.f32 %v1268, %v1276
    %1279 = vrot.lane.b32.xlu0 %v927, 40
    %v1280 = vpop.permute.xlu0 %1279
    %1281 = vrot.lane.b32.xlu0 %v930, 40
    %v1282 = vpop.permute.xlu0 %1281
    %v1286 = vsel %vm227, %v1277, 0
    %v1289 = vsel %vm227, %v1278, 0
    %1291 = vmatpush.msra.mxu0 0.0
    %1292 = vmatpush.msra.mxu0 0.0
    %1293 = vmatpush.msra.mxu0 0.0
    %1294 = vmatpush.msra.mxu0 0.0
    %1295 = vmatpush.msra.mxu0 0.0
    %1296 = vmatpush.msra.mxu0 0.0
    %1297 = vmatpush.msra.mxu0 0.0
    %1298 = vmatpush.msra.mxu0 0.0
    %1299 = vmatpush.msra.mxu0 0.0
    %1300 = vmatpush.msra.mxu0 0.0
    %1301 = vmatpush.msra.mxu0 0.0
    %1302 = vmatpush.msra.mxu0 0.0
    %1303 = vmatpush.msra.mxu0 0.0
    %1304 = vmatpush.msra.mxu0 0.0
    %1305 = vmatpush.msra.mxu0 %v1282
    %1306 = vmatpush.msra.mxu0 %v1280
    %1307 = vmatmul.f32.gmra.mxu0 %v1286
    %v1308 = vpop.f32.mrf.mxu0
    %v1309 = vadd.f32 0.0, %v1308
    %1310 = vmatmul.f32.gmra.mxu0 %v1289
    %v1311 = vpop.f32.mrf.mxu0
    %v1312 = vadd.f32 0.0, %v1311
    %1313 = vdwg.mxu0
    %1316 = vrot.lane.b32.xlu0 %v1117, 8
    %v1317 = vpop.permute.xlu0 %1316
    %1318 = vrot.lane.b32.xlu0 %v1120, 8
    %v1319 = vpop.permute.xlu0 %1318
    %1324 = vrot.lane.b32.xlu0 %v1213, 16
    %v1325 = vpop.permute.xlu0 %1324
    %1326 = vrot.lane.b32.xlu0 %v1216, 16
    %v1327 = vpop.permute.xlu0 %1326
    %1332 = vrot.lane.b32.xlu0 %v1309, 24
    %v1333 = vpop.permute.xlu0 %1332
    %1334 = vrot.lane.b32.xlu0 %v1312, 24
    %v1335 = vpop.permute.xlu0 %1334
    %v1338 = vsel %vm195, %v1021, %v1317
    %v1339 = vsel %vm195, %v1024, %v1319
    %v1340 = vsel %vm227, %v1338, %v1325
    %v1341 = vsel %vm227, %v1339, %v1327
    %v1342 = vsel %vm601, %v1340, %v1333
    %v1343 = vsel %vm601, %v1341, %v1335
    %s1344 = scalar_lea.vmem %s8, 32
    %v1345 = vld [vmem:[%s1344] sm:$0xff]
    %v1346 = vld [vmem:[%s1344 + $0x8] sm:$0xff]
    %v1347 = vld [vmem:[%s1344 + $0x10] sm:$0xff]
    %v1348 = vld [vmem:[%s1344 + $0x18] sm:$0xff]
    %v1350 = vsel %vm86, %v1342, 0
    %v1353 = vsel %vm86, %v1343, 0
    %1355 = vmatpush.msra.mxu0 0.0
    %1356 = vmatpush.msra.mxu0 0.0
    %1357 = vmatpush.msra.mxu0 0.0
    %1358 = vmatpush.msra.mxu0 0.0
    %1359 = vmatpush.msra.mxu0 0.0
    %1360 = vmatpush.msra.mxu0 0.0
    %1361 = vmatpush.msra.mxu0 0.0
    %1362 = vmatpush.msra.mxu0 0.0
    %1363 = vmatpush.msra.mxu0 0.0
    %1364 = vmatpush.msra.mxu0 0.0
    %1365 = vmatpush.msra.mxu0 0.0
    %1366 = vmatpush.msra.mxu0 0.0
    %1367 = vmatpush.msra.mxu0 %v1348
    %1368 = vmatpush.msra.mxu0 %v1347
    %1369 = vmatpush.msra.mxu0 %v1346
    %1370 = vmatpush.msra.mxu0 %v1345
    %1371 = vmatmul.f32.gmra.mxu0 %v1350
    %v1372 = vpop.f32.mrf.mxu0
    %v1373 = vadd.f32 0.0, %v1372
    %1374 = vmatmul.f32.gmra.mxu0 %v1353
    %v1375 = vpop.f32.mrf.mxu0
    %v1376 = vadd.f32 0.0, %v1375
    %1377 = vdwg.mxu0
    %v1378 = vadd.f32 %v829, %v1373
    %v1379 = vadd.f32 %v830, %v1376
    %s1380 = scalar_lea.vmem %s9, 1
    %v1381 = vld [vmem:[%s1380] sm:$0x1]
    %v1383 = vperm.slane %v1381, 0
    %v1385 = vadd.f32 %v1378, %v1383
    %v1386 = vadd.f32 %v1379, %v1383
    %s1387 = scalar_lea.vmem %s10, 1
    %v1388 = vld [vmem:[%s1387] sm:$0x1]
    %s1389 = scalar_lea.vmem %s11, 1
    %v1390 = vld [vmem:[%s1389] sm:$0x1]
    %v1391 = vsel %vm86, %v1385, 0.0
    %1392 = vadd.xlane.f32.xlu0 %v1391
    %v1393 = vpop.xlane.xlu0 %1392
    %v1394 = vsel %vm86, %v1386, 0.0
    %1395 = vadd.xlane.f32.xlu0 %v1394
    %v1396 = vpop.xlane.xlu0 %1395
    %v1397 = vmul.f32 %v1393, %v99
    %v1398 = vmul.f32 %v1396, %v99
    %v1399 = vmul.f32 %v1385, %v1385
    %v1400 = vmul.f32 %v1386, %v1386
    %v1401 = vsel %vm86, %v1399, 0.0
    %1402 = vadd.xlane.f32.xlu0 %v1401
    %v1403 = vpop.xlane.xlu0 %1402
    %v1404 = vsel %vm86, %v1400, 0.0
    %1405 = vadd.xlane.f32.xlu0 %v1404
    %v1406 = vpop.xlane.xlu0 %1405
    %v1407 = vmul.f32 %v1403, %v99
    %v1408 = vmul.f32 %v1406, %v99
    %v1409 = vmul.f32 %v1397, %v1397
    %v1410 = vmul.f32 %v1398, %v1398
    %v1411 = vsub.f32 %v1407, %v1409
    %v1412 = vsub.f32 %v1408, %v1410
    %v1413 = vsub.f32 %v1385, %v1397
    %v1414 = vsub.f32 %v1386, %v1398
    %v1415 = vadd.f32 %v1411, 1e-05
    %v1416 = vadd.f32 %v1412, 1e-05
    %v1417 = vrsqrt.pop %v1415
    %v1418 = vmul.f32 %v1417, %v1415
    %v1419 = vmul.f32 %v1418, %v1417
    %v1420 = vmul.f32 0.5, %v1419
    %v1421 = vsub.f32 1.5, %v1420
    %v1422 = vmul.f32 %v1417, %v1421
    %vm1423 = vweird.f32 %v1415
    %vm1424 = vweird.f32 %v1417
    %vm1425 = vmor %vm1423, %vm1424
    %v1426 = vsel %vm1425, %v1417, %v1422
    %v1427 = vrsqrt.pop %v1416
    %v1428 = vmul.f32 %v1427, %v1416
    %v1429 = vmul.f32 %v1428, %v1427
    %v1430 = vmul.f32 0.5, %v1429
    %v1431 = vsub.f32 1.5, %v1430
    %v1432 = vmul.f32 %v1427, %v1431
    %vm1433 = vweird.f32 %v1416
    %vm1434 = vweird.f32 %v1427
    %vm1435 = vmor %vm1433, %vm1434
    %v1436 = vsel %vm1435, %v1427, %v1432
    %v1437 = vmul.f32 %v1413, %v1426
    %v1438 = vmul.f32 %v1414, %v1436
    %v1440 = vperm.slane %v1388, 0
    %v1442 = vmul.f32 %v1437, %v1440
    %v1443 = vmul.f32 %v1438, %v1440
    %v1445 = vperm.slane %v1390, 0
    %v1447 = vadd.f32 %v1442, %v1445
    %v1448 = vadd.f32 %v1443, %v1445
    %s1449 = scalar_lea.vmem %s12, 32
    %v1450 = vld [vmem:[%s1449] sm:$0xff]
    %v1451 = vld [vmem:[%s1449 + $0x8] sm:$0xff]
    %v1452 = vld [vmem:[%s1449 + $0x10] sm:$0xff]
    %v1453 = vld [vmem:[%s1449 + $0x18] sm:$0xff]
    %s1454 = scalar_lea.vmem %s13, 1
    %v1455 = vld [vmem:[%s1454] sm:$0x1]
    %v1457 = vperm.slane %v1455, 0
    %v1460 = vsel %vm86, %v1447, 0
    %v1463 = vsel %vm86, %v1448, 0
    %1465 = vmatpush.msra.mxu0 0.0
    %1466 = vmatpush.msra.mxu0 0.0
    %1467 = vmatpush.msra.mxu0 0.0
    %1468 = vmatpush.msra.mxu0 0.0
    %1469 = vmatpush.msra.mxu0 0.0
    %1470 = vmatpush.msra.mxu0 0.0
    %1471 = vmatpush.msra.mxu0 0.0
    %1472 = vmatpush.msra.mxu0 0.0
    %1473 = vmatpush.msra.mxu0 0.0
    %1474 = vmatpush.msra.mxu0 0.0
    %1475 = vmatpush.msra.mxu0 0.0
    %1476 = vmatpush.msra.mxu0 0.0
    %1477 = vmatpush.msra.mxu0 %v1453
    %1478 = vmatpush.msra.mxu0 %v1452
    %1479 = vmatpush.msra.mxu0 %v1451
    %1480 = vmatpush.msra.mxu0 %v1450
    %1481 = vmatmul.f32.gmra.mxu0 %v1460
    %v1482 = vpop.f32.mrf.mxu0
    %v1483 = vadd.f32 %v1457, %v1482
    %1484 = vmatmul.f32.gmra.mxu0 %v1463
    %v1485 = vpop.f32.mrf.mxu0
    %v1486 = vadd.f32 %v1457, %v1485
    %1487 = vdwg.mxu0
    %v1488 = vmul.f32 %v1483, 1.702
    %v1489 = vmul.f32 %v1486, 1.702
    %v1490 = vxor.u32 %v1488, 2147483648
    %v1491 = vxor.u32 %v1489, 2147483648
    %v1492 = vmul.f32 %v1490, 1.442695
    %v1493 = vpow.pop %v1492
    %v1494 = vmul.f32 %v1491, 1.442695
    %v1495 = vpow.pop %v1494
    %v1496 = vadd.f32 %v1493, 1.0
    %v1497 = vadd.f32 %v1495, 1.0
    %v1498 = vrcp.pop %v1496
    %v1499 = vmul.f32 %v1496, %v1498
    %v1500 = vsub.f32 1.0, %v1499
    %v1501 = vmul.f32 %v1498, %v1500
    %v1502 = vadd.f32 %v1498, %v1501
    %vm1503 = vweird.f32 %v1496
    %vm1504 = vweird.f32 %v1498
    %vm1505 = vmor %vm1503, %vm1504
    %v1506 = vsel %vm1505, %v1498, %v1502
    %v1507 = vand.u32 2147483647, %v1496
    %vm1508 = vcmp.eq.f32.partialorder %v1507, 8.507059e+37
    %v1509 = vand.u32 %v1496, 2147483648
    %v1510 = vor.u32 1.1754944e-38, %v1509
    %v1511 = vsel %vm1508, %v1510, %v1506
    %v1512 = vmul.f32 1.0, %v1511
    %v1513 = vrcp.pop %v1497
    %v1514 = vmul.f32 %v1497, %v1513
    %v1515 = vsub.f32 1.0, %v1514
    %v1516 = vmul.f32 %v1513, %v1515
    %v1517 = vadd.f32 %v1513, %v1516
    %vm1518 = vweird.f32 %v1497
    %vm1519 = vweird.f32 %v1513
    %vm1520 = vmor %vm1518, %vm1519
    %v1521 = vsel %vm1520, %v1513, %v1517
    %v1522 = vand.u32 2147483647, %v1497
    %vm1523 = vcmp.eq.f32.partialorder %v1522, 8.507059e+37
    %v1524 = vand.u32 %v1497, 2147483648
    %v1525 = vor.u32 1.1754944e-38, %v1524
    %v1526 = vsel %vm1523, %v1525, %v1521
    %v1527 = vmul.f32 1.0, %v1526
    %v1528 = vmul.f32 %v1483, %v1512
    %v1529 = vmul.f32 %v1486, %v1527
    %s1530 = scalar_lea.vmem %s14, 128
    %v1531 = vld [vmem:[%s1530] sm:$0xff]
    %v1532 = vld [vmem:[%s1530 + $0x8] sm:$0xff]
    %v1533 = vld [vmem:[%s1530 + $0x10] sm:$0xff]
    %v1534 = vld [vmem:[%s1530 + $0x18] sm:$0xff]
    %v1535 = vld [vmem:[%s1530 + $0x20] sm:$0xff]
    %v1536 = vld [vmem:[%s1530 + $0x28] sm:$0xff]
    %v1537 = vld [vmem:[%s1530 + $0x30] sm:$0xff]
    %v1538 = vld [vmem:[%s1530 + $0x38] sm:$0xff]
    %v1539 = vld [vmem:[%s1530 + $0x40] sm:$0xff]
    %v1540 = vld [vmem:[%s1530 + $0x48] sm:$0xff]
    %v1541 = vld [vmem:[%s1530 + $0x50] sm:$0xff]
    %v1542 = vld [vmem:[%s1530 + $0x58] sm:$0xff]
    %v1543 = vld [vmem:[%s1530 + $0x60] sm:$0xff]
    %v1544 = vld [vmem:[%s1530 + $0x68] sm:$0xff]
    %v1545 = vld [vmem:[%s1530 + $0x70] sm:$0xff]
    %v1546 = vld [vmem:[%s1530 + $0x78] sm:$0xff]
    %1547 = vmatpush.msra.mxu0 %v1546
    %1548 = vmatpush.msra.mxu0 %v1545
    %1549 = vmatpush.msra.mxu0 %v1544
    %1550 = vmatpush.msra.mxu0 %v1543
    %1551 = vmatpush.msra.mxu0 %v1542
    %1552 = vmatpush.msra.mxu0 %v1541
    %1553 = vmatpush.msra.mxu0 %v1540
    %1554 = vmatpush.msra.mxu0 %v1539
    %1555 = vmatpush.msra.mxu0 %v1538
    %1556 = vmatpush.msra.mxu0 %v1537
    %1557 = vmatpush.msra.mxu0 %v1536
    %1558 = vmatpush.msra.mxu0 %v1535
    %1559 = vmatpush.msra.mxu0 %v1534
    %1560 = vmatpush.msra.mxu0 %v1533
    %1561 = vmatpush.msra.mxu0 %v1532
    %1562 = vmatpush.msra.mxu0 %v1531
    %1563 = vmatmul.f32.gmra.mxu0 %v1528
    %v1564 = vpop.f32.mrf.mxu0
    %v1565 = vadd.f32 0.0, %v1564
    %1566 = vmatmul.f32.gmra.mxu0 %v1529
    %v1567 = vpop.f32.mrf.mxu0
    %v1568 = vadd.f32 0.0, %v1567
    %1569 = vdwg.mxu0
    %v1570 = vadd.f32 %v1385, %v1565
    %v1571 = vadd.f32 %v1386, %v1568
    %s1572 = scalar_lea.vmem %s15, 1
    %v1573 = vld [vmem:[%s1572] sm:$0x1]
    %v1575 = vperm.slane %v1573, 0
    %v1577 = vadd.f32 %v1570, %v1575
    %v1578 = vadd.f32 %v1571, %v1575
    %1579 = vst.msk [vmem:[#allocation2] sm:$0xff] %vm86, %v1577
    %1580 = vst.msk [vmem:[#allocation2 + $0x8] sm:$0xff] %vm86, %v1578
    %s1581 = sld [smem:[#allocation4]]
    %s1582 = scalar_lea.vmem [#allocation2], %s1581
    %v1583 = vld [vmem:[%s1582] sm:$0x1]
    %vm1584 = vcmask 253952
    %1585 = vst.msk [vmem:[#allocation3] sm:$0x1] %vm1584, %v1583
    %s1586 = sld [smem:[#allocation4 + $0x1]]
    %s1587 = scalar_lea.vmem [#allocation2], %s1586
    %v1588 = vld [vmem:[%s1587] sm:$0x1]
    %1589 = vst.msk [vmem:[#allocation3 + $0x1] sm:$0x1] %vm1584, %v1588
    %v1590 = vld [vmem:[#allocation3] sm:$0x3]
    %v1591 = vld [vmem:[%s16] sm:$0x1]
    %v1592 = vld [vmem:[%s17] sm:$0x1]
    %vm1593 = vcmask 254976
    %v1594 = vsel %vm1593, %v1590, 0.0
    %1595 = vadd.xlane.f32.xlu0 %v1594
    %v1596 = vpop.xlane.xlu0 %1595
    %v1597 = vmul.f32 %v1596, %v99
    %v1598 = vmul.f32 %v1590, %v1590
    %v1599 = vsel %vm1593, %v1598, 0.0
    %1600 = vadd.xlane.f32.xlu0 %v1599
    %v1601 = vpop.xlane.xlu0 %1600
    %v1602 = vmul.f32 %v1601, %v99
    %v1603 = vmul.f32 %v1597, %v1597
    %v1604 = vsub.f32 %v1602, %v1603
    %v1605 = vsub.f32 %v1590, %v1597
    %v1606 = vadd.f32 %v1604, 1e-05
    %v1607 = vrsqrt.pop %v1606
    %v1608 = vmul.f32 %v1607, %v1606
    %v1609 = vmul.f32 %v1608, %v1607
    %v1610 = vmul.f32 0.5, %v1609
    %v1611 = vsub.f32 1.5, %v1610
    %v1612 = vmul.f32 %v1607, %v1611
    %vm1613 = vweird.f32 %v1606
    %vm1614 = vweird.f32 %v1607
    %vm1615 = vmor %vm1613, %vm1614
    %v1616 = vsel %vm1615, %v1607, %v1612
    %v1617 = vmul.f32 %v1605, %v1616
    %v1619 = vperm.slane %v1591, 0
    %v1621 = vmul.f32 %v1617, %v1619
    %v1623 = vperm.slane %v1592, 0
    %v1625 = vadd.f32 %v1621, %v1623
    %v1626 = vld [vmem:[%s18] sm:$0xff]
    %v1627 = vld [vmem:[%s18 + $0x8] sm:$0xff]
    %v1628 = vld [vmem:[%s18 + $0x10] sm:$0xff]
    %v1629 = vld [vmem:[%s18 + $0x18] sm:$0xff]
    %v1631 = vsel %vm86, %v1625, 0
    %1633 = vmatpush.msra.mxu0 0.0
    %1634 = vmatpush.msra.mxu0 0.0
    %1635 = vmatpush.msra.mxu0 0.0
    %1636 = vmatpush.msra.mxu0 0.0
    %1637 = vmatpush.msra.mxu0 0.0
    %1638 = vmatpush.msra.mxu0 0.0
    %1639 = vmatpush.msra.mxu0 0.0
    %1640 = vmatpush.msra.mxu0 0.0
    %1641 = vmatpush.msra.mxu0 0.0
    %1642 = vmatpush.msra.mxu0 0.0
    %1643 = vmatpush.msra.mxu0 0.0
    %1644 = vmatpush.msra.mxu0 0.0
    %1645 = vmatpush.msra.mxu0 %v1629
    %1646 = vmatpush.msra.mxu0 %v1628
    %1647 = vmatpush.msra.mxu0 %v1627
    %1648 = vmatpush.msra.mxu0 %v1626
    %1649 = vmatmul.f32.gmra.mxu0 %v1631
    %v1650 = vpop.f32.mrf.mxu0
    %v1651 = vadd.f32 0.0, %v1650
    %1652 = vdwg.mxu0
    %vm1653 = vcmask 123904
    %1654 = vst.msk [vmem:[#allocation7] sm:$0x3] %vm1653, %v1651
    // Predicated region
    $region82: #{tpu_custom_call.1} parent=1 // pred_check
      _
    $region83: #{tpu_custom_call.1} parent=1 // pred_check_branch
      %1656 = sbr.rel (0) target = $region85
    $region84: #{tpu_custom_call.1} parent=1 // pred_region
      %1658 = vsyncadd [#allocation5], 0
      %s1660 = sshll.u32 [#allocation7], 4
      %s1661 = int_to_ptr.vmem [resolvable:$true] %s1660
      %s1662 = sshll.u32 %s19, 4
      %s1663 = int_to_ptr.hbm [resolvable:$true] %s1662
      %1665 = dma.vmem_to_hbm [thread:$0]  %s1661, 32, %s1663, [#allocation5]
    $region85: #{tpu_custom_call.1} parent=1 // pred_fallthru
      _
    // Predicated region
    $region86: #{tpu_custom_call.1} parent=1 // pred_check
      _
    $region87: #{tpu_custom_call.1} parent=1 // pred_check_branch
      %1667 = sbr.rel (0) target = $region89
    $region88: #{tpu_custom_call.1} parent=1 // pred_region
      %1669 = dma.done [#allocation5], 32
    $region89: #{tpu_custom_call.1} parent=1 // pred_fallthru
      _
    %1670 = vsyncpa [#allocation5], 1
    %1671 = vsyncpa [#allocation6], 1

</llo_original>
